<compile_context>
chip_gen: v6e
topology: v6e:2x2x1
jax: 0.10.0
libtpu: 0.0.40
codegen_flags: <defaults>
</compile_context>

<pallas_src>
import math

import jax
import jax.numpy as jnp
from jax import lax
from jax.experimental import pallas as pl
from jax.experimental.pallas import tpu as pltpu

# ---------------- model hyper-params (small, consistent with the module) ----
VOCAB = 50
EMB_DIM = 32          # d_model  (module default 512, shrunk for the demo)
NHEAD = 4             # (module default 8)
HEAD_DIM = EMB_DIM // NHEAD
DIM_FF = 64           # (torch default 2048, shrunk)
CLS_HID = 128         # hidden of the output MLP (as in the module)
NUM_TOKEN = 1         # module default
SEQ = 8
BATCH = 2
BS = BATCH * SEQ      # flattened rows
LN_EPS = 1e-5

VOCAB_PAD = 56                    # vocab rounded up to a sublane multiple
TAB_ROWS = VOCAB_PAD + BS         # 72: [padded embedding ; PE tiled per row]
OUT_PAD = 128                     # lane-dense output / classifier width
LANES = 128
NEG_INF = -1e30

# ---------------- single parameter slab layout (rows, all 8-aligned) --------
ROWS_TAB = TAB_ROWS               # 72
ROWS_WQK = EMB_DIM                # 32   (W_q | W_k) -> (32, 64)
ROWS_WVO = EMB_DIM                # 32   head-stacked W_v[:,h] @ W_o[h,:] -> (32, 128)
ROWS_W1 = EMB_DIM                 # 32
ROWS_W2 = DIM_FF                  # 64
ROWS_WC1 = EMB_DIM                # 32
ROWS_WC2 = CLS_HID                # 128  (padded to 128 output lanes)
ROWS_VEC = 16                     # 11 bias/LN rows, padded to 16
ROWS_MASK = BS                    # 16   block-diagonal attention mask

OFF_TAB = 0
OFF_WQK = OFF_TAB + ROWS_TAB      # 72
OFF_WVO = OFF_WQK + ROWS_WQK      # 104
OFF_W1 = OFF_WVO + ROWS_WVO       # 136
OFF_W2 = OFF_W1 + ROWS_W1         # 168
OFF_WC1 = OFF_W2 + ROWS_W2        # 232
OFF_WC2 = OFF_WC1 + ROWS_WC1      # 264
OFF_VEC = OFF_WC2 + ROWS_WC2      # 392
OFF_MASK = OFF_VEC + ROWS_VEC     # 408
SLAB_ROWS = OFF_MASK + ROWS_MASK  # 424


def _layernorm(x, g, b):
    mu = jnp.mean(x, axis=-1, keepdims=True)
    var = jnp.mean((x - mu) ** 2, axis=-1, keepdims=True)
    return (x - mu) * jax.lax.rsqrt(var + LN_EPS) * g + b


def fused_kernel(tok_ref, slab_ref, out_ref):
    # ---- unpack the small bias / LayerNorm rows (one block load) -----------
    vecs = slab_ref[OFF_VEC:OFF_VEC + ROWS_VEC, :]        # (16, 128)
    bqk  = vecs[0:1, 0:2 * EMB_DIM]                       # (1, 64)
    bvo  = vecs[1:2, 0:NHEAD * EMB_DIM]                   # (1, 128)
    bo   = vecs[2:3, 0:EMB_DIM]
    ln1g = vecs[3:4, 0:EMB_DIM]
    ln1b = vecs[4:5, 0:EMB_DIM]
    ln2g = vecs[5:6, 0:EMB_DIM]
    ln2b = vecs[6:7, 0:EMB_DIM]
    b1   = vecs[7:8, 0:DIM_FF]
    b2   = vecs[8:9, 0:EMB_DIM]
    bc1  = vecs[9:10, 0:CLS_HID]
    bc2  = vecs[10:11, 0:OUT_PAD]

    # ---- embedding + positional encoding via a single two-hot matmul -------
    tok = tok_ref[...]                                    # (16, 1) int32
    col = lax.broadcasted_iota(jnp.int32, (BS, TAB_ROWS), 1)
    row = lax.broadcasted_iota(jnp.int32, (BS, TAB_ROWS), 0)
    sel = jnp.logical_or(col == tok, col == VOCAB_PAD + row).astype(jnp.float32)
    tab = slab_ref[OFF_TAB:OFF_TAB + TAB_ROWS, 0:EMB_DIM]           # (72, 32)
    x = jnp.dot(sel, tab, preferred_element_type=jnp.float32)       # (16, 32) emb + PE

    # ---- fused Q/K projection ------------------------------------------------
    wqk = slab_ref[OFF_WQK:OFF_WQK + EMB_DIM, 0:2 * EMB_DIM]        # (32, 64)
    qk = jnp.dot(x, wqk, preferred_element_type=jnp.float32) + bqk  # (16, 64)
    q = qk[:, 0:EMB_DIM]
    k = qk[:, EMB_DIM:2 * EMB_DIM]

    # ---- head-fused value * out-projection: one lane-dense N=128 matmul -----
    wvo = slab_ref[OFF_WVO:OFF_WVO + EMB_DIM, :]                    # (32, 128)
    vproj = jnp.dot(x, wvo, preferred_element_type=jnp.float32) + bvo   # (16, 128)

    # precomputed block-diagonal mask (rows of different batches don't attend)
    mask = slab_ref[OFF_MASK:OFF_MASK + BS, 0:BS]                   # (16, 16)

    # ---- multi-head attention -------------------------------------------------
    scale = 1.0 / math.sqrt(HEAD_DIM)
    dn = (((1,), (1,)), ((), ()))          # contract dim 1 of both -> q @ k^T (no XLU transpose)
    attn = jnp.zeros((BS, EMB_DIM), jnp.float32)
    for h in range(NHEAD):
        qh = q[:, h * HEAD_DIM:(h + 1) * HEAD_DIM]                  # (16, 8)
        kh = k[:, h * HEAD_DIM:(h + 1) * HEAD_DIM]                  # (16, 8)
        s = lax.dot_general(qh, kh, dn, preferred_element_type=jnp.float32)
        s = s * scale + mask
        s = s - jnp.max(s, axis=-1, keepdims=True)
        e = jnp.exp(s)
        p = e * pl.reciprocal(jnp.sum(e, axis=-1, keepdims=True), approx=True)
        attn = attn + jnp.dot(p, vproj[:, h * EMB_DIM:(h + 1) * EMB_DIM],
                              preferred_element_type=jnp.float32)   # (16, 32)
    attn = attn + bo

    # ---- residual + LayerNorm 1 (post-norm) --------------------------------
    h1 = _layernorm(x + attn, ln1g, ln1b)

    # ---- feed-forward -------------------------------------------------------
    w1 = slab_ref[OFF_W1:OFF_W1 + EMB_DIM, 0:DIM_FF]                # (32, 64)
    w2 = slab_ref[OFF_W2:OFF_W2 + DIM_FF, 0:EMB_DIM]                # (64, 32)
    ff = jnp.maximum(jnp.dot(h1, w1, preferred_element_type=jnp.float32) + b1, 0.0)
    ff = jnp.dot(ff, w2, preferred_element_type=jnp.float32) + b2

    # ---- residual + LayerNorm 2 --------------------------------------------
    h2 = _layernorm(h1 + ff, ln2g, ln2b)

    # ---- classifier head on ALL rows (M=16 is free); wrapper slices rows 0::SEQ
    wc1 = slab_ref[OFF_WC1:OFF_WC1 + EMB_DIM, 0:CLS_HID]            # (32, 128)
    wc2 = slab_ref[OFF_WC2:OFF_WC2 + CLS_HID, 0:OUT_PAD]            # (128, 128)
    o = jnp.maximum(jnp.dot(h2, wc1, preferred_element_type=jnp.float32) + bc1, 0.0)
    o = jnp.dot(o, wc2, preferred_element_type=jnp.float32) + bc2
    out_ref[...] = o.astype(out_ref.dtype)                          # (16, 128) dense store


def transformer_classifier_forward(tokens, slab):
    """tokens: int32 [B, S].  slab: packed f32 [SLAB_ROWS, 128].
    Returns float32 [B, NUM_TOKEN]."""
    B, S = tokens.shape
    assert B == BATCH and S == SEQ

    tok2d = tokens.reshape(BS, 1).astype(jnp.int32)

    out = pl.pallas_call(
        fused_kernel,
        out_shape=jax.ShapeDtypeStruct((BS, OUT_PAD), jnp.float32),
        grid=(1,),
        in_specs=[pl.BlockSpec((BS, 1), lambda i: (0, 0)),
                  pl.BlockSpec((SLAB_ROWS, LANES), lambda i: (0, 0))],
        out_specs=pl.BlockSpec((BS, OUT_PAD), lambda i: (0, 0)),
        compiler_params=pltpu.CompilerParams(
            dimension_semantics=("arbitrary",)),
    )(tok2d, slab)
    # token 0 of each sequence lives at flattened rows 0, SEQ, 2*SEQ, ...
    return out[0::SEQ, :NUM_TOKEN]                                   # (B, NUM_TOKEN)


def make_params(key):
    ks = jax.random.split(key, 9)

    def lin(k, din, dout):
        kw, kb = jax.random.split(k)
        w = jax.random.normal(kw, (din, dout), jnp.float32) * (1.0 / math.sqrt(din))
        b = jax.random.normal(kb, (1, dout), jnp.float32) * 0.01
        return w, b

    # sinusoidal positional encoding table (S, D)
    pos = jnp.arange(SEQ, dtype=jnp.float32)[:, None]
    div = jnp.exp(jnp.arange(0, EMB_DIM, 2, dtype=jnp.float32)
                  * (-math.log(10000.0) / EMB_DIM))
    pe = jnp.zeros((SEQ, EMB_DIM), jnp.float32)
    pe = pe.at[:, 0::2].set(jnp.sin(pos * div))
    pe = pe.at[:, 1::2].set(jnp.cos(pos * div))

    emb = jax.random.normal(ks[0], (VOCAB, EMB_DIM), jnp.float32) * 0.02
    wq, bq = lin(ks[1], EMB_DIM, EMB_DIM)
    wk, bk = lin(ks[2], EMB_DIM, EMB_DIM)
    wv, bv = lin(ks[3], EMB_DIM, EMB_DIM)
    wo, bo = lin(ks[4], EMB_DIM, EMB_DIM)
    w1, b1 = lin(ks[5], EMB_DIM, DIM_FF)
    w2, b2 = lin(ks[6], DIM_FF, EMB_DIM)
    wc1, bc1 = lin(ks[7], EMB_DIM, CLS_HID)
    wc2, bc2 = lin(ks[8], CLS_HID, NUM_TOKEN)
    ln1g = jnp.ones((1, EMB_DIM), jnp.float32)
    ln1b = jnp.zeros((1, EMB_DIM), jnp.float32)
    ln2g = jnp.ones((1, EMB_DIM), jnp.float32)
    ln2b = jnp.zeros((1, EMB_DIM), jnp.float32)

    # ---- derived / fused weights --------------------------------------------
    # table: [embedding padded to 56 rows ; positional encoding tiled over B]
    tab = jnp.concatenate(
        [emb,
         jnp.zeros((VOCAB_PAD - VOCAB, EMB_DIM), jnp.float32),
         jnp.tile(pe, (BATCH, 1))], axis=0)                          # (72, 32)

    wqk = jnp.concatenate([wq, wk], axis=1)                          # (32, 64)
    bqk = jnp.concatenate([bq, bk], axis=1)                          # (1, 64)

    # head-fused value*output projection:  Wvo_h = W_v[:, h] @ W_o[h, :]
    wvo_blocks, bvo_blocks = [], []
    for h in range(NHEAD):
        sl = slice(h * HEAD_DIM, (h + 1) * HEAD_DIM)
        wvo_blocks.append(wv[:, sl] @ wo[sl, :])                     # (32, 32)
        bvo_blocks.append(bv[:, sl] @ wo[sl, :])                     # (1, 32)
    wvo = jnp.concatenate(wvo_blocks, axis=1)                        # (32, 128)
    bvo = jnp.concatenate(bvo_blocks, axis=1)                        # (1, 128)

    # lane-dense classifier tail: pad the final projection to 128 columns
    wc2p = jnp.zeros((CLS_HID, OUT_PAD), jnp.float32).at[:, :NUM_TOKEN].set(wc2)
    bc2p = jnp.zeros((1, OUT_PAD), jnp.float32).at[:, :NUM_TOKEN].set(bc2)

    # block-diagonal attention mask over the flattened batch
    rb = jnp.arange(BS)[:, None] // SEQ
    cb = jnp.arange(BS)[None, :] // SEQ
    mask = jnp.where(rb == cb, 0.0, NEG_INF).astype(jnp.float32)     # (16, 16)

    # ---- pack EVERYTHING into one (424, 128) lane-dense f32 slab ------------
    slab = jnp.zeros((SLAB_ROWS, LANES), jnp.float32)

    def put(s, row, arr):
        return s.at[row:row + arr.shape[0], :arr.shape[1]].set(arr)

    slab = put(slab, OFF_TAB, tab)
    slab = put(slab, OFF_WQK, wqk)
    slab = put(slab, OFF_WVO, wvo)
    slab = put(slab, OFF_W1, w1)
    slab = put(slab, OFF_W2, w2)
    slab = put(slab, OFF_WC1, wc1)
    slab = put(slab, OFF_WC2, wc2p)
    vec_rows = [bqk, bvo, bo, ln1g, ln1b, ln2g, ln2b, b1, b2, bc1, bc2p]
    for r, vrow in enumerate(vec_rows):
        slab = slab.at[OFF_VEC + r, :vrow.shape[-1]].set(vrow[0])
    slab = put(slab, OFF_MASK, mask)
    return slab


if __name__ == "__main__":
    key = jax.random.PRNGKey(0)
    k_tok, k_par = jax.random.split(key)
    slab = make_params(k_par)
    tokens = jax.random.randint(k_tok, (BATCH, SEQ), 0, VOCAB, dtype=jnp.int32)

    y = transformer_classifier_forward(tokens, slab)
    y = jax.block_until_ready(y)
    assert y.shape == (BATCH, NUM_TOKEN), y.shape
    assert jnp.all(jnp.isfinite(y))
    print("KERNEL_OK")
</pallas_src>

<mosaic_0001>
module attributes {stable_mosaic.version = 11 : i64} {
  func.func @fused_kernel(%arg0: i32, %arg1: memref<16x1xi32, #tpu.memory_space<vmem>>, %arg2: memref<424x128xf32, #tpu.memory_space<vmem>>, %arg3: memref<16x128xf32, #tpu.memory_space<vmem>>) attributes {dimension_semantics = [#tpu.dimension_semantics<arbitrary>], iteration_bounds = array<i64: 1>, scalar_prefetch = 0 : i64, scratch_operands = 0 : i64, tpu.core_type = #tpu.core_type<tc>, window_params = [{pipeline_mode = #tpu.pipeline_mode<synchronous>, transform_indices = @transform_0, window_bounds = array<i64: 16, 1>}, {pipeline_mode = #tpu.pipeline_mode<synchronous>, transform_indices = @transform_1, window_bounds = array<i64: 424, 128>}, {pipeline_mode = #tpu.pipeline_mode<synchronous>, transform_indices = @transform_2, window_bounds = array<i64: 16, 128>}]} {
    %c392 = arith.constant 392 : index
    %c0 = arith.constant 0 : index
    %0 = vector.load %arg2[%c392, %c0] : memref<424x128xf32, #tpu.memory_space<vmem>>, vector<16x128xf32>
    %1 = vector.extract_strided_slice %0 {offsets = [0, 0], sizes = [1, 64], strides = [1, 1]} : vector<16x128xf32> to vector<1x64xf32>
    %2 = vector.extract_strided_slice %0 {offsets = [1, 0], sizes = [1, 128], strides = [1, 1]} : vector<16x128xf32> to vector<1x128xf32>
    %3 = vector.extract_strided_slice %0 {offsets = [2, 0], sizes = [1, 32], strides = [1, 1]} : vector<16x128xf32> to vector<1x32xf32>
    %4 = vector.extract_strided_slice %0 {offsets = [3, 0], sizes = [1, 32], strides = [1, 1]} : vector<16x128xf32> to vector<1x32xf32>
    %5 = vector.extract_strided_slice %0 {offsets = [4, 0], sizes = [1, 32], strides = [1, 1]} : vector<16x128xf32> to vector<1x32xf32>
    %6 = vector.extract_strided_slice %0 {offsets = [5, 0], sizes = [1, 32], strides = [1, 1]} : vector<16x128xf32> to vector<1x32xf32>
    %7 = vector.extract_strided_slice %0 {offsets = [6, 0], sizes = [1, 32], strides = [1, 1]} : vector<16x128xf32> to vector<1x32xf32>
    %8 = vector.extract_strided_slice %0 {offsets = [7, 0], sizes = [1, 64], strides = [1, 1]} : vector<16x128xf32> to vector<1x64xf32>
    %9 = vector.extract_strided_slice %0 {offsets = [8, 0], sizes = [1, 32], strides = [1, 1]} : vector<16x128xf32> to vector<1x32xf32>
    %10 = vector.extract_strided_slice %0 {offsets = [9, 0], sizes = [1, 128], strides = [1, 1]} : vector<16x128xf32> to vector<1x128xf32>
    %11 = vector.extract_strided_slice %0 {offsets = [10, 0], sizes = [1, 128], strides = [1, 1]} : vector<16x128xf32> to vector<1x128xf32>
    %c0_0 = arith.constant 0 : index
    %c0_1 = arith.constant 0 : index
    %12 = vector.load %arg1[%c0_0, %c0_1] : memref<16x1xi32, #tpu.memory_space<vmem>>, vector<16x1xi32>
    %13 = tpu.iota {dimensions = array<i32: 1>} : vector<16x72xi32>
    %14 = tpu.iota {dimensions = array<i32: 0>} : vector<16x72xi32>
    %15 = vector.broadcast %12 : vector<16x1xi32> to vector<16x72xi32>
    %16 = arith.cmpi eq, %13, %15 : vector<16x72xi32>
    %c56_i32 = arith.constant 56 : i32
    %17 = vector.broadcast %c56_i32 : i32 to vector<16x72xi32>
    %18 = arith.addi %17, %14 : vector<16x72xi32>
    %19 = arith.cmpi eq, %13, %18 : vector<16x72xi32>
    %20 = arith.ori %16, %19 : vector<16x72xi1>
    %21 = arith.extui %20 : vector<16x72xi1> to vector<16x72xi32>
    %22 = arith.sitofp %21 : vector<16x72xi32> to vector<16x72xf32>
    %c0_2 = arith.constant 0 : index
    %c0_3 = arith.constant 0 : index
    %23 = vector.load %arg2[%c0_2, %c0_3] : memref<424x128xf32, #tpu.memory_space<vmem>>, vector<72x32xf32>
    %cst = arith.constant dense<0.000000e+00> : vector<16x32xf32>
    %24 = tpu.matmul %22, %23, %cst {dimension_numbers = #tpu.dot_dimension_numbers<[1], [0], [0], [1], [0, 0, 1, 1], [], []>} : vector<16x72xf32>, vector<72x32xf32>, vector<16x32xf32> -> vector<16x32xf32>
    %c72 = arith.constant 72 : index
    %c0_4 = arith.constant 0 : index
    %25 = vector.load %arg2[%c72, %c0_4] : memref<424x128xf32, #tpu.memory_space<vmem>>, vector<32x64xf32>
    %cst_5 = arith.constant dense<0.000000e+00> : vector<16x64xf32>
    %26 = tpu.matmul %24, %25, %cst_5 {dimension_numbers = #tpu.dot_dimension_numbers<[1], [0], [0], [1], [0, 0, 1, 1], [], []>} : vector<16x32xf32>, vector<32x64xf32>, vector<16x64xf32> -> vector<16x64xf32>
    %27 = vector.broadcast %1 : vector<1x64xf32> to vector<16x64xf32>
    %28 = arith.addf %26, %27 : vector<16x64xf32>
    %29 = vector.extract_strided_slice %28 {offsets = [0, 0], sizes = [16, 32], strides = [1, 1]} : vector<16x64xf32> to vector<16x32xf32>
    %30 = vector.extract_strided_slice %28 {offsets = [0, 32], sizes = [16, 32], strides = [1, 1]} : vector<16x64xf32> to vector<16x32xf32>
    %c104 = arith.constant 104 : index
    %c0_6 = arith.constant 0 : index
    %31 = vector.load %arg2[%c104, %c0_6] : memref<424x128xf32, #tpu.memory_space<vmem>>, vector<32x128xf32>
    %cst_7 = arith.constant dense<0.000000e+00> : vector<16x128xf32>
    %32 = tpu.matmul %24, %31, %cst_7 {dimension_numbers = #tpu.dot_dimension_numbers<[1], [0], [0], [1], [0, 0, 1, 1], [], []>} : vector<16x32xf32>, vector<32x128xf32>, vector<16x128xf32> -> vector<16x128xf32>
    %33 = vector.broadcast %2 : vector<1x128xf32> to vector<16x128xf32>
    %34 = arith.addf %32, %33 : vector<16x128xf32>
    %c408 = arith.constant 408 : index
    %c0_8 = arith.constant 0 : index
    %35 = vector.load %arg2[%c408, %c0_8] : memref<424x128xf32, #tpu.memory_space<vmem>>, vector<16x16xf32>
    %cst_9 = arith.constant 0.000000e+00 : f32
    %36 = vector.broadcast %cst_9 : f32 to vector<16x32xf32>
    %37 = vector.extract_strided_slice %29 {offsets = [0, 0], sizes = [16, 8], strides = [1, 1]} : vector<16x32xf32> to vector<16x8xf32>
    %38 = vector.extract_strided_slice %30 {offsets = [0, 0], sizes = [16, 8], strides = [1, 1]} : vector<16x32xf32> to vector<16x8xf32>
    %cst_10 = arith.constant dense<0.000000e+00> : vector<16x16xf32>
    %39 = tpu.matmul %37, %38, %cst_10 {dimension_numbers = #tpu.dot_dimension_numbers<[1], [1], [0], [0], [0, 0, 1, 0], [], []>} : vector<16x8xf32>, vector<16x8xf32>, vector<16x16xf32> -> vector<16x16xf32>
    %cst_11 = arith.constant 0.353553385 : f32
    %40 = vector.broadcast %cst_11 : f32 to vector<16x16xf32>
    %41 = arith.mulf %39, %40 : vector<16x16xf32>
    %42 = arith.addf %41, %35 : vector<16x16xf32>
    %cst_12 = arith.constant dense<0xFF800000> : vector<16xf32>
    %43 = vector.multi_reduction <maximumf>, %42, %cst_12 [1] : vector<16x16xf32> to vector<16xf32>
    %44 = vector.shape_cast %43 : vector<16xf32> to vector<16x1xf32>
    %45 = vector.broadcast %44 : vector<16x1xf32> to vector<16x16xf32>
    %46 = arith.subf %42, %45 : vector<16x16xf32>
    %47 = math.exp %46 : vector<16x16xf32>
    %cst_13 = arith.constant dense<0.000000e+00> : vector<16xf32>
    %48 = vector.multi_reduction <add>, %47, %cst_13 [1] : vector<16x16xf32> to vector<16xf32>
    %49 = vector.shape_cast %48 : vector<16xf32> to vector<16x1xf32>
    %50 = tpu.reciprocal %49 {approx = true} : vector<16x1xf32> -> vector<16x1xf32>
    %51 = vector.broadcast %50 : vector<16x1xf32> to vector<16x16xf32>
    %52 = arith.mulf %47, %51 : vector<16x16xf32>
    %53 = vector.extract_strided_slice %34 {offsets = [0, 0], sizes = [16, 32], strides = [1, 1]} : vector<16x128xf32> to vector<16x32xf32>
    %cst_14 = arith.constant dense<0.000000e+00> : vector<16x32xf32>
    %54 = tpu.matmul %52, %53, %cst_14 {dimension_numbers = #tpu.dot_dimension_numbers<[1], [0], [0], [1], [0, 0, 1, 1], [], []>} : vector<16x16xf32>, vector<16x32xf32>, vector<16x32xf32> -> vector<16x32xf32>
    %55 = arith.addf %36, %54 : vector<16x32xf32>
    %56 = vector.extract_strided_slice %29 {offsets = [0, 8], sizes = [16, 8], strides = [1, 1]} : vector<16x32xf32> to vector<16x8xf32>
    %57 = vector.extract_strided_slice %30 {offsets = [0, 8], sizes = [16, 8], strides = [1, 1]} : vector<16x32xf32> to vector<16x8xf32>
    %cst_15 = arith.constant dense<0.000000e+00> : vector<16x16xf32>
    %58 = tpu.matmul %56, %57, %cst_15 {dimension_numbers = #tpu.dot_dimension_numbers<[1], [1], [0], [0], [0, 0, 1, 0], [], []>} : vector<16x8xf32>, vector<16x8xf32>, vector<16x16xf32> -> vector<16x16xf32>
    %cst_16 = arith.constant 0.353553385 : f32
    %59 = vector.broadcast %cst_16 : f32 to vector<16x16xf32>
    %60 = arith.mulf %58, %59 : vector<16x16xf32>
    %61 = arith.addf %60, %35 : vector<16x16xf32>
    %cst_17 = arith.constant dense<0xFF800000> : vector<16xf32>
    %62 = vector.multi_reduction <maximumf>, %61, %cst_17 [1] : vector<16x16xf32> to vector<16xf32>
    %63 = vector.shape_cast %62 : vector<16xf32> to vector<16x1xf32>
    %64 = vector.broadcast %63 : vector<16x1xf32> to vector<16x16xf32>
    %65 = arith.subf %61, %64 : vector<16x16xf32>
    %66 = math.exp %65 : vector<16x16xf32>
    %cst_18 = arith.constant dense<0.000000e+00> : vector<16xf32>
    %67 = vector.multi_reduction <add>, %66, %cst_18 [1] : vector<16x16xf32> to vector<16xf32>
    %68 = vector.shape_cast %67 : vector<16xf32> to vector<16x1xf32>
    %69 = tpu.reciprocal %68 {approx = true} : vector<16x1xf32> -> vector<16x1xf32>
    %70 = vector.broadcast %69 : vector<16x1xf32> to vector<16x16xf32>
    %71 = arith.mulf %66, %70 : vector<16x16xf32>
    %72 = vector.extract_strided_slice %34 {offsets = [0, 32], sizes = [16, 32], strides = [1, 1]} : vector<16x128xf32> to vector<16x32xf32>
    %cst_19 = arith.constant dense<0.000000e+00> : vector<16x32xf32>
    %73 = tpu.matmul %71, %72, %cst_19 {dimension_numbers = #tpu.dot_dimension_numbers<[1], [0], [0], [1], [0, 0, 1, 1], [], []>} : vector<16x16xf32>, vector<16x32xf32>, vector<16x32xf32> -> vector<16x32xf32>
    %74 = arith.addf %55, %73 : vector<16x32xf32>
    %75 = vector.extract_strided_slice %29 {offsets = [0, 16], sizes = [16, 8], strides = [1, 1]} : vector<16x32xf32> to vector<16x8xf32>
    %76 = vector.extract_strided_slice %30 {offsets = [0, 16], sizes = [16, 8], strides = [1, 1]} : vector<16x32xf32> to vector<16x8xf32>
    %cst_20 = arith.constant dense<0.000000e+00> : vector<16x16xf32>
    %77 = tpu.matmul %75, %76, %cst_20 {dimension_numbers = #tpu.dot_dimension_numbers<[1], [1], [0], [0], [0, 0, 1, 0], [], []>} : vector<16x8xf32>, vector<16x8xf32>, vector<16x16xf32> -> vector<16x16xf32>
    %cst_21 = arith.constant 0.353553385 : f32
    %78 = vector.broadcast %cst_21 : f32 to vector<16x16xf32>
    %79 = arith.mulf %77, %78 : vector<16x16xf32>
    %80 = arith.addf %79, %35 : vector<16x16xf32>
    %cst_22 = arith.constant dense<0xFF800000> : vector<16xf32>
    %81 = vector.multi_reduction <maximumf>, %80, %cst_22 [1] : vector<16x16xf32> to vector<16xf32>
    %82 = vector.shape_cast %81 : vector<16xf32> to vector<16x1xf32>
    %83 = vector.broadcast %82 : vector<16x1xf32> to vector<16x16xf32>
    %84 = arith.subf %80, %83 : vector<16x16xf32>
    %85 = math.exp %84 : vector<16x16xf32>
    %cst_23 = arith.constant dense<0.000000e+00> : vector<16xf32>
    %86 = vector.multi_reduction <add>, %85, %cst_23 [1] : vector<16x16xf32> to vector<16xf32>
    %87 = vector.shape_cast %86 : vector<16xf32> to vector<16x1xf32>
    %88 = tpu.reciprocal %87 {approx = true} : vector<16x1xf32> -> vector<16x1xf32>
    %89 = vector.broadcast %88 : vector<16x1xf32> to vector<16x16xf32>
    %90 = arith.mulf %85, %89 : vector<16x16xf32>
    %91 = vector.extract_strided_slice %34 {offsets = [0, 64], sizes = [16, 32], strides = [1, 1]} : vector<16x128xf32> to vector<16x32xf32>
    %cst_24 = arith.constant dense<0.000000e+00> : vector<16x32xf32>
    %92 = tpu.matmul %90, %91, %cst_24 {dimension_numbers = #tpu.dot_dimension_numbers<[1], [0], [0], [1], [0, 0, 1, 1], [], []>} : vector<16x16xf32>, vector<16x32xf32>, vector<16x32xf32> -> vector<16x32xf32>
    %93 = arith.addf %74, %92 : vector<16x32xf32>
    %94 = vector.extract_strided_slice %29 {offsets = [0, 24], sizes = [16, 8], strides = [1, 1]} : vector<16x32xf32> to vector<16x8xf32>
    %95 = vector.extract_strided_slice %30 {offsets = [0, 24], sizes = [16, 8], strides = [1, 1]} : vector<16x32xf32> to vector<16x8xf32>
    %cst_25 = arith.constant dense<0.000000e+00> : vector<16x16xf32>
    %96 = tpu.matmul %94, %95, %cst_25 {dimension_numbers = #tpu.dot_dimension_numbers<[1], [1], [0], [0], [0, 0, 1, 0], [], []>} : vector<16x8xf32>, vector<16x8xf32>, vector<16x16xf32> -> vector<16x16xf32>
    %cst_26 = arith.constant 0.353553385 : f32
    %97 = vector.broadcast %cst_26 : f32 to vector<16x16xf32>
    %98 = arith.mulf %96, %97 : vector<16x16xf32>
    %99 = arith.addf %98, %35 : vector<16x16xf32>
    %cst_27 = arith.constant dense<0xFF800000> : vector<16xf32>
    %100 = vector.multi_reduction <maximumf>, %99, %cst_27 [1] : vector<16x16xf32> to vector<16xf32>
    %101 = vector.shape_cast %100 : vector<16xf32> to vector<16x1xf32>
    %102 = vector.broadcast %101 : vector<16x1xf32> to vector<16x16xf32>
    %103 = arith.subf %99, %102 : vector<16x16xf32>
    %104 = math.exp %103 : vector<16x16xf32>
    %cst_28 = arith.constant dense<0.000000e+00> : vector<16xf32>
    %105 = vector.multi_reduction <add>, %104, %cst_28 [1] : vector<16x16xf32> to vector<16xf32>
    %106 = vector.shape_cast %105 : vector<16xf32> to vector<16x1xf32>
    %107 = tpu.reciprocal %106 {approx = true} : vector<16x1xf32> -> vector<16x1xf32>
    %108 = vector.broadcast %107 : vector<16x1xf32> to vector<16x16xf32>
    %109 = arith.mulf %104, %108 : vector<16x16xf32>
    %110 = vector.extract_strided_slice %34 {offsets = [0, 96], sizes = [16, 32], strides = [1, 1]} : vector<16x128xf32> to vector<16x32xf32>
    %cst_29 = arith.constant dense<0.000000e+00> : vector<16x32xf32>
    %111 = tpu.matmul %109, %110, %cst_29 {dimension_numbers = #tpu.dot_dimension_numbers<[1], [0], [0], [1], [0, 0, 1, 1], [], []>} : vector<16x16xf32>, vector<16x32xf32>, vector<16x32xf32> -> vector<16x32xf32>
    %112 = arith.addf %93, %111 : vector<16x32xf32>
    %113 = vector.broadcast %3 : vector<1x32xf32> to vector<16x32xf32>
    %114 = arith.addf %112, %113 : vector<16x32xf32>
    %115 = arith.addf %24, %114 : vector<16x32xf32>
    %cst_30 = arith.constant dense<0.000000e+00> : vector<16xf32>
    %116 = vector.multi_reduction <add>, %115, %cst_30 [1] : vector<16x32xf32> to vector<16xf32>
    %117 = vector.shape_cast %116 : vector<16xf32> to vector<16x1xf32>
    %cst_31 = arith.constant 3.200000e+01 : f32
    %118 = vector.broadcast %cst_31 : f32 to vector<16x1xf32>
    %119 = arith.divf %117, %118 : vector<16x1xf32>
    %120 = vector.broadcast %119 : vector<16x1xf32> to vector<16x32xf32>
    %121 = arith.subf %115, %120 : vector<16x32xf32>
    %122 = arith.mulf %121, %121 : vector<16x32xf32>
    %cst_32 = arith.constant dense<0.000000e+00> : vector<16xf32>
    %123 = vector.multi_reduction <add>, %122, %cst_32 [1] : vector<16x32xf32> to vector<16xf32>
    %124 = vector.shape_cast %123 : vector<16xf32> to vector<16x1xf32>
    %cst_33 = arith.constant 3.200000e+01 : f32
    %125 = vector.broadcast %cst_33 : f32 to vector<16x1xf32>
    %126 = arith.divf %124, %125 : vector<16x1xf32>
    %127 = vector.broadcast %119 : vector<16x1xf32> to vector<16x32xf32>
    %128 = arith.subf %115, %127 : vector<16x32xf32>
    %cst_34 = arith.constant 9.99999974E-6 : f32
    %129 = vector.broadcast %cst_34 : f32 to vector<16x1xf32>
    %130 = arith.addf %126, %129 : vector<16x1xf32>
    %131 = math.rsqrt %130 : vector<16x1xf32>
    %132 = vector.broadcast %131 : vector<16x1xf32> to vector<16x32xf32>
    %133 = arith.mulf %128, %132 : vector<16x32xf32>
    %134 = vector.broadcast %4 : vector<1x32xf32> to vector<16x32xf32>
    %135 = arith.mulf %133, %134 : vector<16x32xf32>
    %136 = vector.broadcast %5 : vector<1x32xf32> to vector<16x32xf32>
    %137 = arith.addf %135, %136 : vector<16x32xf32>
    %c136 = arith.constant 136 : index
    %c0_35 = arith.constant 0 : index
    %138 = vector.load %arg2[%c136, %c0_35] : memref<424x128xf32, #tpu.memory_space<vmem>>, vector<32x64xf32>
    %c168 = arith.constant 168 : index
    %c0_36 = arith.constant 0 : index
    %139 = vector.load %arg2[%c168, %c0_36] : memref<424x128xf32, #tpu.memory_space<vmem>>, vector<64x32xf32>
    %cst_37 = arith.constant dense<0.000000e+00> : vector<16x64xf32>
    %140 = tpu.matmul %137, %138, %cst_37 {dimension_numbers = #tpu.dot_dimension_numbers<[1], [0], [0], [1], [0, 0, 1, 1], [], []>} : vector<16x32xf32>, vector<32x64xf32>, vector<16x64xf32> -> vector<16x64xf32>
    %141 = vector.broadcast %8 : vector<1x64xf32> to vector<16x64xf32>
    %142 = arith.addf %140, %141 : vector<16x64xf32>
    %cst_38 = arith.constant 0.000000e+00 : f32
    %143 = vector.broadcast %cst_38 : f32 to vector<16x64xf32>
    %144 = arith.maximumf %142, %143 : vector<16x64xf32>
    %cst_39 = arith.constant dense<0.000000e+00> : vector<16x32xf32>
    %145 = tpu.matmul %144, %139, %cst_39 {dimension_numbers = #tpu.dot_dimension_numbers<[1], [0], [0], [1], [0, 0, 1, 1], [], []>} : vector<16x64xf32>, vector<64x32xf32>, vector<16x32xf32> -> vector<16x32xf32>
    %146 = vector.broadcast %9 : vector<1x32xf32> to vector<16x32xf32>
    %147 = arith.addf %145, %146 : vector<16x32xf32>
    %148 = arith.addf %137, %147 : vector<16x32xf32>
    %cst_40 = arith.constant dense<0.000000e+00> : vector<16xf32>
    %149 = vector.multi_reduction <add>, %148, %cst_40 [1] : vector<16x32xf32> to vector<16xf32>
    %150 = vector.shape_cast %149 : vector<16xf32> to vector<16x1xf32>
    %cst_41 = arith.constant 3.200000e+01 : f32
    %151 = vector.broadcast %cst_41 : f32 to vector<16x1xf32>
    %152 = arith.divf %150, %151 : vector<16x1xf32>
    %153 = vector.broadcast %152 : vector<16x1xf32> to vector<16x32xf32>
    %154 = arith.subf %148, %153 : vector<16x32xf32>
    %155 = arith.mulf %154, %154 : vector<16x32xf32>
    %cst_42 = arith.constant dense<0.000000e+00> : vector<16xf32>
    %156 = vector.multi_reduction <add>, %155, %cst_42 [1] : vector<16x32xf32> to vector<16xf32>
    %157 = vector.shape_cast %156 : vector<16xf32> to vector<16x1xf32>
    %cst_43 = arith.constant 3.200000e+01 : f32
    %158 = vector.broadcast %cst_43 : f32 to vector<16x1xf32>
    %159 = arith.divf %157, %158 : vector<16x1xf32>
    %160 = vector.broadcast %152 : vector<16x1xf32> to vector<16x32xf32>
    %161 = arith.subf %148, %160 : vector<16x32xf32>
    %cst_44 = arith.constant 9.99999974E-6 : f32
    %162 = vector.broadcast %cst_44 : f32 to vector<16x1xf32>
    %163 = arith.addf %159, %162 : vector<16x1xf32>
    %164 = math.rsqrt %163 : vector<16x1xf32>
    %165 = vector.broadcast %164 : vector<16x1xf32> to vector<16x32xf32>
    %166 = arith.mulf %161, %165 : vector<16x32xf32>
    %167 = vector.broadcast %6 : vector<1x32xf32> to vector<16x32xf32>
    %168 = arith.mulf %166, %167 : vector<16x32xf32>
    %169 = vector.broadcast %7 : vector<1x32xf32> to vector<16x32xf32>
    %170 = arith.addf %168, %169 : vector<16x32xf32>
    %c232 = arith.constant 232 : index
    %c0_45 = arith.constant 0 : index
    %171 = vector.load %arg2[%c232, %c0_45] : memref<424x128xf32, #tpu.memory_space<vmem>>, vector<32x128xf32>
    %c264 = arith.constant 264 : index
    %c0_46 = arith.constant 0 : index
    %172 = vector.load %arg2[%c264, %c0_46] : memref<424x128xf32, #tpu.memory_space<vmem>>, vector<128x128xf32>
    %cst_47 = arith.constant dense<0.000000e+00> : vector<16x128xf32>
    %173 = tpu.matmul %170, %171, %cst_47 {dimension_numbers = #tpu.dot_dimension_numbers<[1], [0], [0], [1], [0, 0, 1, 1], [], []>} : vector<16x32xf32>, vector<32x128xf32>, vector<16x128xf32> -> vector<16x128xf32>
    %174 = vector.broadcast %10 : vector<1x128xf32> to vector<16x128xf32>
    %175 = arith.addf %173, %174 : vector<16x128xf32>
    %cst_48 = arith.constant 0.000000e+00 : f32
    %176 = vector.broadcast %cst_48 : f32 to vector<16x128xf32>
    %177 = arith.maximumf %175, %176 : vector<16x128xf32>
    %cst_49 = arith.constant dense<0.000000e+00> : vector<16x128xf32>
    %178 = tpu.matmul %177, %172, %cst_49 {dimension_numbers = #tpu.dot_dimension_numbers<[1], [0], [0], [1], [0, 0, 1, 1], [], []>} : vector<16x128xf32>, vector<128x128xf32>, vector<16x128xf32> -> vector<16x128xf32>
    %179 = vector.broadcast %11 : vector<1x128xf32> to vector<16x128xf32>
    %180 = arith.addf %178, %179 : vector<16x128xf32>
    %c0_50 = arith.constant 0 : index
    %c0_51 = arith.constant 0 : index
    %181 = vector.load %arg3[%c0_50, %c0_51] : memref<16x128xf32, #tpu.memory_space<vmem>>, vector<16x128xf32>
    tpu.vector_store %arg3[%c0_50, %c0_51], %180 {strides = array<i32>} : memref<16x128xf32, #tpu.memory_space<vmem>>, vector<16x128xf32>,
    return
  }
  func.func @transform_0(%arg0: i32) -> (i32, i32) {
    %c0_i32 = arith.constant 0 : i32
    %c0_i32_0 = arith.constant 0 : i32
    %c0_i32_1 = arith.constant 0 : i32
    return %c0_i32, %c0_i32_0 : i32, i32
  }
  func.func @transform_1(%arg0: i32) -> (i32, i32) {
    %c0_i32 = arith.constant 0 : i32
    %c0_i32_0 = arith.constant 0 : i32
    %c0_i32_1 = arith.constant 0 : i32
    return %c0_i32, %c0_i32_0 : i32, i32
  }
  func.func @transform_2(%arg0: i32) -> (i32, i32) {
    %c0_i32 = arith.constant 0 : i32
    %c0_i32_0 = arith.constant 0 : i32
    %c0_i32_1 = arith.constant 0 : i32
    return %c0_i32, %c0_i32_0 : i32, i32
  }
}

</mosaic_0001>

<llo_original>
// kernel: tpu_custom_call.1
$region0: #{tpu_custom_call.1}
  #allocation0 [shape = 'u32[]', space=smem, size = 0x4, offset = 0x4, fixed_abs, tag = 'smem constant byte address 0x4 - core index']
  #allocation1 [shape = 'u32[144,128]{1,0:T(1,128)}', space=vmem, size = 0x12000, scoped, tag = 'internal scratch']
  %s0 = inlined_call_operand.vmem [shape: s32[16,1], index: 0, kind: input, shape index: {}]
  %s1 = inlined_call_operand.hbm [shape: f32[424,128], index: 1, kind: input, shape index: {}]
  %s2 = inlined_call_operand.hbm [shape: f32[16,128], index: 2, kind: output, shape index: {}]
  %s3 = sld [smem:[#allocation0]]
  $region22: #{tpu_custom_call.1} parent=0
    _
  %s5 = ssub.s32 1, %s3
  %s6 = scalar_select 0, %s5, %s3
  $region1: #{tpu_custom_call.1} parent=0
    #allocation2 [shape = 'u8[217088]{0}', space=vmem, size = 0x35000, scoped, tag = 'input window, operand 1, single buffered']
    #allocation3 [shape = 's32[1]{0}', space=sflag, size = 0x4, scoped, tag = 'scoped memory for tpu_custom_call.1']
    #allocation4 [shape = 's32[1]{0}', space=sflag, size = 0x4, scoped, tag = 'scoped memory for tpu_custom_call.1']
    #allocation5 [shape = 'u8[8192]{0}', space=vmem, size = 0x2000, scoped, tag = 'output window, operand 0, single buffered']
    %7 = vsyncpa [#allocation3], 0
    %8 = vsyncpa [#allocation4], 0
    // Predicated region
    $region2: #{tpu_custom_call.1} parent=1 // pred_check
      _
    $region3: #{tpu_custom_call.1} parent=1 // pred_check_branch
      %10 = sbr.rel (0) target = $region5
    $region4: #{tpu_custom_call.1} parent=1 // pred_region
      _
    $region5: #{tpu_custom_call.1} parent=1 // pred_fallthru
      _
    // Predicated region
    $region6: #{tpu_custom_call.1} parent=1 // pred_check
      _
    $region7: #{tpu_custom_call.1} parent=1 // pred_check_branch
      %12 = sbr.rel (0) target = $region9
    $region8: #{tpu_custom_call.1} parent=1 // pred_region
      %s14 = ssub.s32 6784, 6784
      %15 = vsyncadd [#allocation3], %s14
      %s16 = sshll.u32 [#allocation2], 4
      %s17 = int_to_ptr.vmem [resolvable:$true] %s16
      %22 = dma.hbm_to_vmem [thread:$0]  %s1, 6784, %s17, [#allocation3], 128, 128, 8
    $region9: #{tpu_custom_call.1} parent=1 // pred_fallthru
      _
    // Predicated region
    $region10: #{tpu_custom_call.1} parent=1 // pred_check
      _
    $region11: #{tpu_custom_call.1} parent=1 // pred_check_branch
      %24 = sbr.rel (0) target = $region13
    $region12: #{tpu_custom_call.1} parent=1 // pred_region
      %25 = dma.done [#allocation3], 6784
    $region13: #{tpu_custom_call.1} parent=1 // pred_fallthru
      _
    %v26 = vld [vmem:[#allocation2 + $0x188] sm:$0xff]
    %v27 = vld [vmem:[#allocation2 + $0x190] sm:$0xff]
    %v28 = vld [vmem:[%s0] sm:$0xff]
    %v29 = vld [vmem:[%s0 + $0x8] sm:$0xff]
    %v30 = vlaneseq
    %v31 = vand.u32 %v30, 127
    %v32 = vlaneseq
    %v33 = vshrl.u32 %v32, 7
    %v34 = vadd.s32 %v33, 8
    %35 = vset.pattern.permute.xlu0 0
    %36 = vperm.xlu0 %35, %v28
    %v37 = vpop.permute.xlu0 %36
    %38 = vset.pattern.permute.xlu0 0
    %39 = vperm.xlu0 %38, %v29
    %v40 = vpop.permute.xlu0 %39
    %vm41 = vcmp.eq.s32.totalorder %v31, %v37
    %vm42 = vcmp.eq.s32.totalorder %v31, %v40
    %v43 = vadd.s32 %v33, 56
    %v44 = vadd.s32 %v34, 56
    %vm45 = vcmp.eq.s32.totalorder %v31, %v43
    %vm46 = vcmp.eq.s32.totalorder %v31, %v44
    %vm47 = vmor %vm41, %vm45
    %vm48 = vmor %vm42, %vm46
    %v49 = vsel %vm47, 1, 0
    %v50 = vsel %vm48, 1, 0
    %v51 = vcvt.s32.f32 %v49
    %v52 = vcvt.s32.f32 %v50
    %v53 = vld [vmem:[#allocation2] sm:$0xff]
    %v54 = vld [vmem:[#allocation2 + $0x8] sm:$0xff]
    %v55 = vld [vmem:[#allocation2 + $0x10] sm:$0xff]
    %v56 = vld [vmem:[#allocation2 + $0x18] sm:$0xff]
    %v57 = vld [vmem:[#allocation2 + $0x20] sm:$0xff]
    %v58 = vld [vmem:[#allocation2 + $0x28] sm:$0xff]
    %v59 = vld [vmem:[#allocation2 + $0x30] sm:$0xff]
    %v60 = vld [vmem:[#allocation2 + $0x38] sm:$0xff]
    %v61 = vld [vmem:[#allocation2 + $0x40] sm:$0xff]
    %vm62 = vcmask 588800
    %v64 = vsel %vm62, %v51, 0
    %v67 = vsel %vm62, %v52, 0
    %69 = vmatprep.subr.mxu0 0.0
    %70 = vmatpush1.msra.mxu0 0.0
    %71 = vmatprep.subr.mxu0 0.0
    %72 = vmatpush1.msra.mxu0 0.0
    %73 = vmatprep.subr.mxu0 0.0
    %74 = vmatpush1.msra.mxu0 0.0
    %75 = vmatprep.subr.mxu0 0.0
    %76 = vmatpush1.msra.mxu0 0.0
    %77 = vmatprep.subr.mxu0 0.0
    %78 = vmatpush1.msra.mxu0 0.0
    %79 = vmatprep.subr.mxu0 0.0
    %80 = vmatpush1.msra.mxu0 0.0
    %81 = vmatprep.subr.mxu0 0.0
    %82 = vmatpush1.msra.mxu0 0.0
    %83 = vmatprep.subr.mxu0 0.0
    %84 = vmatpush1.msra.mxu0 %v61
    %85 = vmatprep.subr.mxu0 0.0
    %86 = vmatpush1.msra.mxu0 %v60
    %87 = vmatprep.subr.mxu0 0.0
    %88 = vmatpush1.msra.mxu0 %v59
    %89 = vmatprep.subr.mxu0 0.0
    %90 = vmatpush1.msra.mxu0 %v58
    %91 = vmatprep.subr.mxu0 0.0
    %92 = vmatpush1.msra.mxu0 %v57
    %93 = vmatprep.subr.mxu0 0.0
    %94 = vmatpush1.msra.mxu0 %v56
    %95 = vmatprep.subr.mxu0 0.0
    %96 = vmatpush1.msra.mxu0 %v55
    %97 = vmatprep.subr.mxu0 0.0
    %98 = vmatpush1.msra.mxu0 %v54
    %99 = vmatprep.subr.mxu0 0.0
    %100 = vmatpush1.msra.mxu0 %v53
    %101 = vmatprep.subr.mxu0 0.0
    %102 = vmatpush2.msra.mxu0 0.0
    %103 = vmatprep.subr.mxu0 0.0
    %104 = vmatpush2.msra.mxu0 0.0
    %105 = vmatprep.subr.mxu0 0.0
    %106 = vmatpush2.msra.mxu0 0.0
    %107 = vmatprep.subr.mxu0 0.0
    %108 = vmatpush2.msra.mxu0 0.0
    %109 = vmatprep.subr.mxu0 0.0
    %110 = vmatpush2.msra.mxu0 0.0
    %111 = vmatprep.subr.mxu0 0.0
    %112 = vmatpush2.msra.mxu0 0.0
    %113 = vmatprep.subr.mxu0 0.0
    %114 = vmatpush2.msra.mxu0 0.0
    %115 = vmatprep.subr.mxu0 0.0
    %116 = vmatpush2.msra.mxu0 0.0
    %117 = vmatprep.subr.mxu0 0.0
    %118 = vmatpush2.msra.mxu0 0.0
    %119 = vmatprep.subr.mxu0 0.0
    %120 = vmatpush2.msra.mxu0 0.0
    %121 = vmatprep.subr.mxu0 0.0
    %122 = vmatpush2.msra.mxu0 0.0
    %123 = vmatprep.subr.mxu0 0.0
    %124 = vmatpush2.msra.mxu0 0.0
    %125 = vmatprep.subr.mxu0 0.0
    %126 = vmatpush2.msra.mxu0 0.0
    %127 = vmatprep.subr.mxu0 0.0
    %128 = vmatpush2.msra.mxu0 0.0
    %129 = vmatprep.subr.mxu0 0.0
    %130 = vmatpush2.msra.mxu0 0.0
    %131 = vmatprep.subr.mxu0 0.0
    %132 = vmatpush2.msra.mxu0 0.0
    %133 = vmatprep.mubr.f32.mxu0 0.0
    %134 = vmatmul.mubr.f32.gmra.mxu0 %v64
    %v135 = vpop.f32.mrf.mxu0
    %v136 = vadd.f32 0.0, %v135
    %v137 = vpop.f32.mrf.mxu0
    %138 = vmatprep.mubr.f32.mxu0 0.0
    %139 = vmatmul.mubr.f32.gmra.mxu0 %v67
    %v140 = vpop.f32.mrf.mxu0
    %v141 = vadd.f32 0.0, %v140
    %v142 = vpop.f32.mrf.mxu0
    %143 = vdwg.mxu0
    %v144 = vld [vmem:[#allocation2 + $0x48] sm:$0xff]
    %v145 = vld [vmem:[#allocation2 + $0x50] sm:$0xff]
    %v146 = vld [vmem:[#allocation2 + $0x58] sm:$0xff]
    %v147 = vld [vmem:[#allocation2 + $0x60] sm:$0xff]
    %v148 = vlaneseq
    %v149 = vshrl.u32 %v148, 7
    %v150 = vsub.s32 0, %v149
    %v151 = vrot.slane %v26, %v150
    %vm152 = vcmask 261120
    %v154 = vsel %vm152, %v136, 0
    %v157 = vsel %vm152, %v141, 0
    %159 = vmatprep.subr.mxu0 0.0
    %160 = vmatpush1.msra.mxu0 0.0
    %161 = vmatprep.subr.mxu0 0.0
    %162 = vmatpush1.msra.mxu0 0.0
    %163 = vmatprep.subr.mxu0 0.0
    %164 = vmatpush1.msra.mxu0 0.0
    %165 = vmatprep.subr.mxu0 0.0
    %166 = vmatpush1.msra.mxu0 0.0
    %167 = vmatprep.subr.mxu0 0.0
    %168 = vmatpush1.msra.mxu0 0.0
    %169 = vmatprep.subr.mxu0 0.0
    %170 = vmatpush1.msra.mxu0 0.0
    %171 = vmatprep.subr.mxu0 0.0
    %172 = vmatpush1.msra.mxu0 0.0
    %173 = vmatprep.subr.mxu0 0.0
    %174 = vmatpush1.msra.mxu0 0.0
    %175 = vmatprep.subr.mxu0 0.0
    %176 = vmatpush1.msra.mxu0 0.0
    %177 = vmatprep.subr.mxu0 0.0
    %178 = vmatpush1.msra.mxu0 0.0
    %179 = vmatprep.subr.mxu0 0.0
    %180 = vmatpush1.msra.mxu0 0.0
    %181 = vmatprep.subr.mxu0 0.0
    %182 = vmatpush1.msra.mxu0 0.0
    %183 = vmatprep.subr.mxu0 0.0
    %184 = vmatpush1.msra.mxu0 %v147
    %185 = vmatprep.subr.mxu0 0.0
    %186 = vmatpush1.msra.mxu0 %v146
    %187 = vmatprep.subr.mxu0 0.0
    %188 = vmatpush1.msra.mxu0 %v145
    %189 = vmatprep.subr.mxu0 0.0
    %190 = vmatpush1.msra.mxu0 %v144
    %191 = vmatprep.subr.mxu0 0.0
    %192 = vmatpush2.msra.mxu0 0.0
    %193 = vmatprep.subr.mxu0 0.0
    %194 = vmatpush2.msra.mxu0 0.0
    %195 = vmatprep.subr.mxu0 0.0
    %196 = vmatpush2.msra.mxu0 0.0
    %197 = vmatprep.subr.mxu0 0.0
    %198 = vmatpush2.msra.mxu0 0.0
    %199 = vmatprep.subr.mxu0 0.0
    %200 = vmatpush2.msra.mxu0 0.0
    %201 = vmatprep.subr.mxu0 0.0
    %202 = vmatpush2.msra.mxu0 0.0
    %203 = vmatprep.subr.mxu0 0.0
    %204 = vmatpush2.msra.mxu0 0.0
    %205 = vmatprep.subr.mxu0 0.0
    %206 = vmatpush2.msra.mxu0 0.0
    %207 = vmatprep.subr.mxu0 0.0
    %208 = vmatpush2.msra.mxu0 0.0
    %209 = vmatprep.subr.mxu0 0.0
    %210 = vmatpush2.msra.mxu0 0.0
    %211 = vmatprep.subr.mxu0 0.0
    %212 = vmatpush2.msra.mxu0 0.0
    %213 = vmatprep.subr.mxu0 0.0
    %214 = vmatpush2.msra.mxu0 0.0
    %215 = vmatprep.subr.mxu0 0.0
    %216 = vmatpush2.msra.mxu0 0.0
    %217 = vmatprep.subr.mxu0 0.0
    %218 = vmatpush2.msra.mxu0 0.0
    %219 = vmatprep.subr.mxu0 0.0
    %220 = vmatpush2.msra.mxu0 0.0
    %221 = vmatprep.subr.mxu0 0.0
    %222 = vmatpush2.msra.mxu0 0.0
    %223 = vmatprep.mubr.f32.mxu0 0.0
    %224 = vmatmul.mubr.f32.gmra.mxu0 %v154
    %v225 = vpop.f32.mrf.mxu0
    %v226 = vadd.f32 %v151, %v225
    %v227 = vpop.f32.mrf.mxu0
    %228 = vmatprep.mubr.f32.mxu0 0.0
    %229 = vmatmul.mubr.f32.gmra.mxu0 %v157
    %v230 = vpop.f32.mrf.mxu0
    %v231 = vadd.f32 %v151, %v230
    %v232 = vpop.f32.mrf.mxu0
    %233 = vdwg.mxu0
    %v234 = vld [vmem:[#allocation2 + $0x68] sm:$0xff]
    %v235 = vld [vmem:[#allocation2 + $0x70] sm:$0xff]
    %v236 = vld [vmem:[#allocation2 + $0x78] sm:$0xff]
    %v237 = vld [vmem:[#allocation2 + $0x80] sm:$0xff]
    %v238 = vlaneseq
    %v239 = vshrl.u32 %v238, 7
    %v240 = vsub.s32 1, %v239
    %v241 = vrot.slane %v26, %v240
    %242 = vmatprep.subr.mxu0 0.0
    %243 = vmatpush1.msra.mxu0 0.0
    %244 = vmatprep.subr.mxu0 0.0
    %245 = vmatpush1.msra.mxu0 0.0
    %246 = vmatprep.subr.mxu0 0.0
    %247 = vmatpush1.msra.mxu0 0.0
    %248 = vmatprep.subr.mxu0 0.0
    %249 = vmatpush1.msra.mxu0 0.0
    %250 = vmatprep.subr.mxu0 0.0
    %251 = vmatpush1.msra.mxu0 0.0
    %252 = vmatprep.subr.mxu0 0.0
    %253 = vmatpush1.msra.mxu0 0.0
    %254 = vmatprep.subr.mxu0 0.0
    %255 = vmatpush1.msra.mxu0 0.0
    %256 = vmatprep.subr.mxu0 0.0
    %257 = vmatpush1.msra.mxu0 0.0
    %258 = vmatprep.subr.mxu0 0.0
    %259 = vmatpush1.msra.mxu0 0.0
    %260 = vmatprep.subr.mxu0 0.0
    %261 = vmatpush1.msra.mxu0 0.0
    %262 = vmatprep.subr.mxu0 0.0
    %263 = vmatpush1.msra.mxu0 0.0
    %264 = vmatprep.subr.mxu0 0.0
    %265 = vmatpush1.msra.mxu0 0.0
    %266 = vmatprep.subr.mxu0 0.0
    %267 = vmatpush1.msra.mxu0 %v237
    %268 = vmatprep.subr.mxu0 0.0
    %269 = vmatpush1.msra.mxu0 %v236
    %270 = vmatprep.subr.mxu0 0.0
    %271 = vmatpush1.msra.mxu0 %v235
    %272 = vmatprep.subr.mxu0 0.0
    %273 = vmatpush1.msra.mxu0 %v234
    %274 = vmatprep.subr.mxu0 0.0
    %275 = vmatpush2.msra.mxu0 0.0
    %276 = vmatprep.subr.mxu0 0.0
    %277 = vmatpush2.msra.mxu0 0.0
    %278 = vmatprep.subr.mxu0 0.0
    %279 = vmatpush2.msra.mxu0 0.0
    %280 = vmatprep.subr.mxu0 0.0
    %281 = vmatpush2.msra.mxu0 0.0
    %282 = vmatprep.subr.mxu0 0.0
    %283 = vmatpush2.msra.mxu0 0.0
    %284 = vmatprep.subr.mxu0 0.0
    %285 = vmatpush2.msra.mxu0 0.0
    %286 = vmatprep.subr.mxu0 0.0
    %287 = vmatpush2.msra.mxu0 0.0
    %288 = vmatprep.subr.mxu0 0.0
    %289 = vmatpush2.msra.mxu0 0.0
    %290 = vmatprep.subr.mxu0 0.0
    %291 = vmatpush2.msra.mxu0 0.0
    %292 = vmatprep.subr.mxu0 0.0
    %293 = vmatpush2.msra.mxu0 0.0
    %294 = vmatprep.subr.mxu0 0.0
    %295 = vmatpush2.msra.mxu0 0.0
    %296 = vmatprep.subr.mxu0 0.0
    %297 = vmatpush2.msra.mxu0 0.0
    %298 = vmatprep.subr.mxu0 0.0
    %299 = vmatpush2.msra.mxu0 0.0
    %300 = vmatprep.subr.mxu0 0.0
    %301 = vmatpush2.msra.mxu0 0.0
    %302 = vmatprep.subr.mxu0 0.0
    %303 = vmatpush2.msra.mxu0 0.0
    %304 = vmatprep.subr.mxu0 0.0
    %305 = vmatpush2.msra.mxu0 0.0
    %306 = vmatprep.mubr.f32.mxu0 0.0
    %307 = vmatmul.mubr.f32.gmra.mxu0 %v154
    %v308 = vpop.f32.mrf.mxu0
    %v309 = vadd.f32 %v241, %v308
    %v310 = vpop.f32.mrf.mxu0
    %311 = vmatprep.mubr.f32.mxu0 0.0
    %312 = vmatmul.mubr.f32.gmra.mxu0 %v157
    %v313 = vpop.f32.mrf.mxu0
    %v314 = vadd.f32 %v241, %v313
    %v315 = vpop.f32.mrf.mxu0
    %316 = vdwg.mxu0
    %v317 = vld [vmem:[#allocation2 + $0x198] sm:$0xff]
    %v318 = vld [vmem:[#allocation2 + $0x1a0] sm:$0xff]
    %321 = vrot.lane.b32.xlu0 %v226, 96
    %v322 = vpop.permute.xlu0 %321
    %323 = vrot.lane.b32.xlu0 %v231, 96
    %v324 = vpop.permute.xlu0 %323
    %vm325 = vcmask 64512
    %v326 = vsel %vm325, %v226, 0
    %v328 = vsel %vm325, %v231, 0
    %v330 = vsel %vm325, %v322, 0
    %v332 = vsel %vm325, %v324, 0
    %334 = vmatprep.subr.mxu0 0.0
    %335 = vmatpush1.xpose.msra.mxu0 0.0
    %336 = vmatprep.subr.mxu0 0.0
    %337 = vmatpush1.xpose.msra.mxu0 0.0
    %338 = vmatprep.subr.mxu0 0.0
    %339 = vmatpush1.xpose.msra.mxu0 0.0
    %340 = vmatprep.subr.mxu0 0.0
    %341 = vmatpush1.xpose.msra.mxu0 0.0
    %342 = vmatprep.subr.mxu0 0.0
    %343 = vmatpush1.xpose.msra.mxu0 0.0
    %344 = vmatprep.subr.mxu0 0.0
    %345 = vmatpush1.xpose.msra.mxu0 0.0
    %346 = vmatprep.subr.mxu0 0.0
    %347 = vmatpush1.xpose.msra.mxu0 0.0
    %348 = vmatprep.subr.mxu0 0.0
    %349 = vmatpush1.xpose.msra.mxu0 0.0
    %350 = vmatprep.subr.mxu0 0.0
    %351 = vmatpush1.xpose.msra.mxu0 0.0
    %352 = vmatprep.subr.mxu0 0.0
    %353 = vmatpush1.xpose.msra.mxu0 0.0
    %354 = vmatprep.subr.mxu0 0.0
    %355 = vmatpush1.xpose.msra.mxu0 0.0
    %356 = vmatprep.subr.mxu0 0.0
    %357 = vmatpush1.xpose.msra.mxu0 0.0
    %358 = vmatprep.subr.mxu0 0.0
    %359 = vmatpush1.xpose.msra.mxu0 0.0
    %360 = vmatprep.subr.mxu0 0.0
    %361 = vmatpush1.xpose.msra.mxu0 0.0
    %362 = vmatprep.subr.mxu0 0.0
    %363 = vmatpush1.xpose.msra.mxu0 %v332
    %364 = vmatprep.subr.mxu0 0.0
    %365 = vmatpush1.xpose.msra.mxu0 %v330
    %366 = vmatprep.subr.mxu0 0.0
    %367 = vmatpush2.xpose.msra.mxu0 0.0
    %368 = vmatprep.subr.mxu0 0.0
    %369 = vmatpush2.xpose.msra.mxu0 0.0
    %370 = vmatprep.subr.mxu0 0.0
    %371 = vmatpush2.xpose.msra.mxu0 0.0
    %372 = vmatprep.subr.mxu0 0.0
    %373 = vmatpush2.xpose.msra.mxu0 0.0
    %374 = vmatprep.subr.mxu0 0.0
    %375 = vmatpush2.xpose.msra.mxu0 0.0
    %376 = vmatprep.subr.mxu0 0.0
    %377 = vmatpush2.xpose.msra.mxu0 0.0
    %378 = vmatprep.subr.mxu0 0.0
    %379 = vmatpush2.xpose.msra.mxu0 0.0
    %380 = vmatprep.subr.mxu0 0.0
    %381 = vmatpush2.xpose.msra.mxu0 0.0
    %382 = vmatprep.subr.mxu0 0.0
    %383 = vmatpush2.xpose.msra.mxu0 0.0
    %384 = vmatprep.subr.mxu0 0.0
    %385 = vmatpush2.xpose.msra.mxu0 0.0
    %386 = vmatprep.subr.mxu0 0.0
    %387 = vmatpush2.xpose.msra.mxu0 0.0
    %388 = vmatprep.subr.mxu0 0.0
    %389 = vmatpush2.xpose.msra.mxu0 0.0
    %390 = vmatprep.subr.mxu0 0.0
    %391 = vmatpush2.xpose.msra.mxu0 0.0
    %392 = vmatprep.subr.mxu0 0.0
    %393 = vmatpush2.xpose.msra.mxu0 0.0
    %394 = vmatprep.subr.mxu0 0.0
    %395 = vmatpush2.xpose.msra.mxu0 0.0
    %396 = vmatprep.subr.mxu0 0.0
    %397 = vmatpush2.xpose.msra.mxu0 0.0
    %398 = vmatprep.mubr.f32.mxu0 0.0
    %399 = vmatmul.mubr.f32.gmra.mxu0 %v326
    %v400 = vpop.f32.mrf.mxu0
    %v401 = vadd.f32 0.0, %v400
    %v402 = vpop.f32.mrf.mxu0
    %403 = vmatprep.mubr.f32.mxu0 0.0
    %404 = vmatmul.mubr.f32.gmra.mxu0 %v328
    %v405 = vpop.f32.mrf.mxu0
    %v406 = vadd.f32 0.0, %v405
    %v407 = vpop.f32.mrf.mxu0
    %408 = vdwg.mxu0
    %v409 = vmul.f32 %v401, 0.35355338
    %v410 = vmul.f32 %v406, 0.35355338
    %v411 = vadd.f32 %v409, %v317
    %v412 = vadd.f32 %v410, %v318
    %vm413 = vcmask 130048
    %v414 = vsel %vm413, %v411, -inf
    %415 = vmax.xlane.f32.xlu0 %v414
    %v416 = vpop.xlane.xlu0 %415
    %v417 = vsel %vm413, %v412, -inf
    %418 = vmax.xlane.f32.xlu0 %v417
    %v419 = vpop.xlane.xlu0 %418
    %v420 = vsub.f32 %v411, %v416
    %v421 = vsub.f32 %v412, %v419
    %v422 = vmul.f32 %v420, 1.442695
    %v423 = vpow.pop %v422
    %v424 = vmul.f32 %v421, 1.442695
    %v425 = vpow.pop %v424
    %v426 = vsel %vm413, %v423, 0.0
    %427 = vadd.xlane.f32.xlu0 %v426
    %v428 = vpop.xlane.xlu0 %427
    %v429 = vsel %vm413, %v425, 0.0
    %430 = vadd.xlane.f32.xlu0 %v429
    %v431 = vpop.xlane.xlu0 %430
    %v432 = vrcp.pop %v428
    %v433 = vrcp.pop %v431
    %v434 = vmul.f32 %v423, %v432
    %v435 = vmul.f32 %v425, %v433
    %436 = vrot.lane.b32.xlu0 %v226, 120
    %v437 = vpop.permute.xlu0 %436
    %438 = vrot.lane.b32.xlu0 %v231, 120
    %v439 = vpop.permute.xlu0 %438
    %440 = vrot.lane.b32.xlu0 %v226, 88
    %v441 = vpop.permute.xlu0 %440
    %442 = vrot.lane.b32.xlu0 %v231, 88
    %v443 = vpop.permute.xlu0 %442
    %v444 = vsel %vm325, %v437, 0
    %v446 = vsel %vm325, %v439, 0
    %v448 = vsel %vm325, %v441, 0
    %v450 = vsel %vm325, %v443, 0
    %452 = vmatprep.subr.mxu0 0.0
    %453 = vmatpush1.xpose.msra.mxu0 0.0
    %454 = vmatprep.subr.mxu0 0.0
    %455 = vmatpush1.xpose.msra.mxu0 0.0
    %456 = vmatprep.subr.mxu0 0.0
    %457 = vmatpush1.xpose.msra.mxu0 0.0
    %458 = vmatprep.subr.mxu0 0.0
    %459 = vmatpush1.xpose.msra.mxu0 0.0
    %460 = vmatprep.subr.mxu0 0.0
    %461 = vmatpush1.xpose.msra.mxu0 0.0
    %462 = vmatprep.subr.mxu0 0.0
    %463 = vmatpush1.xpose.msra.mxu0 0.0
    %464 = vmatprep.subr.mxu0 0.0
    %465 = vmatpush1.xpose.msra.mxu0 0.0
    %466 = vmatprep.subr.mxu0 0.0
    %467 = vmatpush1.xpose.msra.mxu0 0.0
    %468 = vmatprep.subr.mxu0 0.0
    %469 = vmatpush1.xpose.msra.mxu0 0.0
    %470 = vmatprep.subr.mxu0 0.0
    %471 = vmatpush1.xpose.msra.mxu0 0.0
    %472 = vmatprep.subr.mxu0 0.0
    %473 = vmatpush1.xpose.msra.mxu0 0.0
    %474 = vmatprep.subr.mxu0 0.0
    %475 = vmatpush1.xpose.msra.mxu0 0.0
    %476 = vmatprep.subr.mxu0 0.0
    %477 = vmatpush1.xpose.msra.mxu0 0.0
    %478 = vmatprep.subr.mxu0 0.0
    %479 = vmatpush1.xpose.msra.mxu0 0.0
    %480 = vmatprep.subr.mxu0 0.0
    %481 = vmatpush1.xpose.msra.mxu0 %v450
    %482 = vmatprep.subr.mxu0 0.0
    %483 = vmatpush1.xpose.msra.mxu0 %v448
    %484 = vmatprep.subr.mxu0 0.0
    %485 = vmatpush2.xpose.msra.mxu0 0.0
    %486 = vmatprep.subr.mxu0 0.0
    %487 = vmatpush2.xpose.msra.mxu0 0.0
    %488 = vmatprep.subr.mxu0 0.0
    %489 = vmatpush2.xpose.msra.mxu0 0.0
    %490 = vmatprep.subr.mxu0 0.0
    %491 = vmatpush2.xpose.msra.mxu0 0.0
    %492 = vmatprep.subr.mxu0 0.0
    %493 = vmatpush2.xpose.msra.mxu0 0.0
    %494 = vmatprep.subr.mxu0 0.0
    %495 = vmatpush2.xpose.msra.mxu0 0.0
    %496 = vmatprep.subr.mxu0 0.0
    %497 = vmatpush2.xpose.msra.mxu0 0.0
    %498 = vmatprep.subr.mxu0 0.0
    %499 = vmatpush2.xpose.msra.mxu0 0.0
    %500 = vmatprep.subr.mxu0 0.0
    %501 = vmatpush2.xpose.msra.mxu0 0.0
    %502 = vmatprep.subr.mxu0 0.0
    %503 = vmatpush2.xpose.msra.mxu0 0.0
    %504 = vmatprep.subr.mxu0 0.0
    %505 = vmatpush2.xpose.msra.mxu0 0.0
    %506 = vmatprep.subr.mxu0 0.0
    %507 = vmatpush2.xpose.msra.mxu0 0.0
    %508 = vmatprep.subr.mxu0 0.0
    %509 = vmatpush2.xpose.msra.mxu0 0.0
    %510 = vmatprep.subr.mxu0 0.0
    %511 = vmatpush2.xpose.msra.mxu0 0.0
    %512 = vmatprep.subr.mxu0 0.0
    %513 = vmatpush2.xpose.msra.mxu0 0.0
    %514 = vmatprep.subr.mxu0 0.0
    %515 = vmatpush2.xpose.msra.mxu0 0.0
    %516 = vmatprep.mubr.f32.mxu0 0.0
    %517 = vmatmul.mubr.f32.gmra.mxu0 %v444
    %v518 = vpop.f32.mrf.mxu0
    %v519 = vadd.f32 0.0, %v518
    %v520 = vpop.f32.mrf.mxu0
    %521 = vmatprep.mubr.f32.mxu0 0.0
    %522 = vmatmul.mubr.f32.gmra.mxu0 %v446
    %v523 = vpop.f32.mrf.mxu0
    %v524 = vadd.f32 0.0, %v523
    %v525 = vpop.f32.mrf.mxu0
    %526 = vdwg.mxu0
    %v527 = vmul.f32 %v519, 0.35355338
    %v528 = vmul.f32 %v524, 0.35355338
    %v529 = vadd.f32 %v527, %v317
    %v530 = vadd.f32 %v528, %v318
    %v531 = vsel %vm413, %v529, -inf
    %532 = vmax.xlane.f32.xlu0 %v531
    %v533 = vpop.xlane.xlu0 %532
    %v534 = vsel %vm413, %v530, -inf
    %535 = vmax.xlane.f32.xlu0 %v534
    %v536 = vpop.xlane.xlu0 %535
    %v537 = vsub.f32 %v529, %v533
    %v538 = vsub.f32 %v530, %v536
    %v539 = vmul.f32 %v537, 1.442695
    %v540 = vpow.pop %v539
    %v541 = vmul.f32 %v538, 1.442695
    %v542 = vpow.pop %v541
    %v543 = vsel %vm413, %v540, 0.0
    %544 = vadd.xlane.f32.xlu0 %v543
    %v545 = vpop.xlane.xlu0 %544
    %v546 = vsel %vm413, %v542, 0.0
    %547 = vadd.xlane.f32.xlu0 %v546
    %v548 = vpop.xlane.xlu0 %547
    %v549 = vrcp.pop %v545
    %v550 = vrcp.pop %v548
    %v551 = vmul.f32 %v540, %v549
    %v552 = vmul.f32 %v542, %v550
    %555 = vrot.lane.b32.xlu0 %v309, 96
    %v556 = vpop.permute.xlu0 %555
    %557 = vrot.lane.b32.xlu0 %v314, 96
    %v558 = vpop.permute.xlu0 %557
    %v562 = vsel %vm413, %v551, 0
    %v565 = vsel %vm413, %v552, 0
    %567 = vmatprep.subr.mxu0 0.0
    %568 = vmatpush1.msra.mxu0 0.0
    %569 = vmatprep.subr.mxu0 0.0
    %570 = vmatpush1.msra.mxu0 0.0
    %571 = vmatprep.subr.mxu0 0.0
    %572 = vmatpush1.msra.mxu0 0.0
    %573 = vmatprep.subr.mxu0 0.0
    %574 = vmatpush1.msra.mxu0 0.0
    %575 = vmatprep.subr.mxu0 0.0
    %576 = vmatpush1.msra.mxu0 0.0
    %577 = vmatprep.subr.mxu0 0.0
    %578 = vmatpush1.msra.mxu0 0.0
    %579 = vmatprep.subr.mxu0 0.0
    %580 = vmatpush1.msra.mxu0 0.0
    %581 = vmatprep.subr.mxu0 0.0
    %582 = vmatpush1.msra.mxu0 0.0
    %583 = vmatprep.subr.mxu0 0.0
    %584 = vmatpush1.msra.mxu0 0.0
    %585 = vmatprep.subr.mxu0 0.0
    %586 = vmatpush1.msra.mxu0 0.0
    %587 = vmatprep.subr.mxu0 0.0
    %588 = vmatpush1.msra.mxu0 0.0
    %589 = vmatprep.subr.mxu0 0.0
    %590 = vmatpush1.msra.mxu0 0.0
    %591 = vmatprep.subr.mxu0 0.0
    %592 = vmatpush1.msra.mxu0 0.0
    %593 = vmatprep.subr.mxu0 0.0
    %594 = vmatpush1.msra.mxu0 0.0
    %595 = vmatprep.subr.mxu0 0.0
    %596 = vmatpush1.msra.mxu0 %v558
    %597 = vmatprep.subr.mxu0 0.0
    %598 = vmatpush1.msra.mxu0 %v556
    %599 = vmatprep.subr.mxu0 0.0
    %600 = vmatpush2.msra.mxu0 0.0
    %601 = vmatprep.subr.mxu0 0.0
    %602 = vmatpush2.msra.mxu0 0.0
    %603 = vmatprep.subr.mxu0 0.0
    %604 = vmatpush2.msra.mxu0 0.0
    %605 = vmatprep.subr.mxu0 0.0
    %606 = vmatpush2.msra.mxu0 0.0
    %607 = vmatprep.subr.mxu0 0.0
    %608 = vmatpush2.msra.mxu0 0.0
    %609 = vmatprep.subr.mxu0 0.0
    %610 = vmatpush2.msra.mxu0 0.0
    %611 = vmatprep.subr.mxu0 0.0
    %612 = vmatpush2.msra.mxu0 0.0
    %613 = vmatprep.subr.mxu0 0.0
    %614 = vmatpush2.msra.mxu0 0.0
    %615 = vmatprep.subr.mxu0 0.0
    %616 = vmatpush2.msra.mxu0 0.0
    %617 = vmatprep.subr.mxu0 0.0
    %618 = vmatpush2.msra.mxu0 0.0
    %619 = vmatprep.subr.mxu0 0.0
    %620 = vmatpush2.msra.mxu0 0.0
    %621 = vmatprep.subr.mxu0 0.0
    %622 = vmatpush2.msra.mxu0 0.0
    %623 = vmatprep.subr.mxu0 0.0
    %624 = vmatpush2.msra.mxu0 0.0
    %625 = vmatprep.subr.mxu0 0.0
    %626 = vmatpush2.msra.mxu0 0.0
    %627 = vmatprep.subr.mxu0 0.0
    %628 = vmatpush2.msra.mxu0 0.0
    %629 = vmatprep.subr.mxu0 0.0
    %630 = vmatpush2.msra.mxu0 0.0
    %631 = vmatprep.mubr.f32.mxu0 0.0
    %632 = vmatmul.mubr.f32.gmra.mxu0 %v562
    %v633 = vpop.f32.mrf.mxu0
    %v634 = vadd.f32 0.0, %v633
    %v635 = vpop.f32.mrf.mxu0
    %636 = vmatprep.mubr.f32.mxu0 0.0
    %637 = vmatmul.mubr.f32.gmra.mxu0 %v565
    %v638 = vpop.f32.mrf.mxu0
    %v639 = vadd.f32 0.0, %v638
    %v640 = vpop.f32.mrf.mxu0
    %641 = vdwg.mxu0
    %v643 = vsel %vm413, %v434, 0
    %v646 = vsel %vm413, %v435, 0
    %648 = vmatprep.subr.mxu0 0.0
    %649 = vmatpush1.msra.mxu0 0.0
    %650 = vmatprep.subr.mxu0 0.0
    %651 = vmatpush1.msra.mxu0 0.0
    %652 = vmatprep.subr.mxu0 0.0
    %653 = vmatpush1.msra.mxu0 0.0
    %654 = vmatprep.subr.mxu0 0.0
    %655 = vmatpush1.msra.mxu0 0.0
    %656 = vmatprep.subr.mxu0 0.0
    %657 = vmatpush1.msra.mxu0 0.0
    %658 = vmatprep.subr.mxu0 0.0
    %659 = vmatpush1.msra.mxu0 0.0
    %660 = vmatprep.subr.mxu0 0.0
    %661 = vmatpush1.msra.mxu0 0.0
    %662 = vmatprep.subr.mxu0 0.0
    %663 = vmatpush1.msra.mxu0 0.0
    %664 = vmatprep.subr.mxu0 0.0
    %665 = vmatpush1.msra.mxu0 0.0
    %666 = vmatprep.subr.mxu0 0.0
    %667 = vmatpush1.msra.mxu0 0.0
    %668 = vmatprep.subr.mxu0 0.0
    %669 = vmatpush1.msra.mxu0 0.0
    %670 = vmatprep.subr.mxu0 0.0
    %671 = vmatpush1.msra.mxu0 0.0
    %672 = vmatprep.subr.mxu0 0.0
    %673 = vmatpush1.msra.mxu0 0.0
    %674 = vmatprep.subr.mxu0 0.0
    %675 = vmatpush1.msra.mxu0 0.0
    %676 = vmatprep.subr.mxu0 0.0
    %677 = vmatpush1.msra.mxu0 %v314
    %678 = vmatprep.subr.mxu0 0.0
    %679 = vmatpush1.msra.mxu0 %v309
    %680 = vmatprep.subr.mxu0 0.0
    %681 = vmatpush2.msra.mxu0 0.0
    %682 = vmatprep.subr.mxu0 0.0
    %683 = vmatpush2.msra.mxu0 0.0
    %684 = vmatprep.subr.mxu0 0.0
    %685 = vmatpush2.msra.mxu0 0.0
    %686 = vmatprep.subr.mxu0 0.0
    %687 = vmatpush2.msra.mxu0 0.0
    %688 = vmatprep.subr.mxu0 0.0
    %689 = vmatpush2.msra.mxu0 0.0
    %690 = vmatprep.subr.mxu0 0.0
    %691 = vmatpush2.msra.mxu0 0.0
    %692 = vmatprep.subr.mxu0 0.0
    %693 = vmatpush2.msra.mxu0 0.0
    %694 = vmatprep.subr.mxu0 0.0
    %695 = vmatpush2.msra.mxu0 0.0
    %696 = vmatprep.subr.mxu0 0.0
    %697 = vmatpush2.msra.mxu0 0.0
    %698 = vmatprep.subr.mxu0 0.0
    %699 = vmatpush2.msra.mxu0 0.0
    %700 = vmatprep.subr.mxu0 0.0
    %701 = vmatpush2.msra.mxu0 0.0
    %702 = vmatprep.subr.mxu0 0.0
    %703 = vmatpush2.msra.mxu0 0.0
    %704 = vmatprep.subr.mxu0 0.0
    %705 = vmatpush2.msra.mxu0 0.0
    %706 = vmatprep.subr.mxu0 0.0
    %707 = vmatpush2.msra.mxu0 0.0
    %708 = vmatprep.subr.mxu0 0.0
    %709 = vmatpush2.msra.mxu0 0.0
    %710 = vmatprep.subr.mxu0 0.0
    %711 = vmatpush2.msra.mxu0 0.0
    %712 = vmatprep.mubr.f32.mxu0 0.0
    %713 = vmatmul.mubr.f32.gmra.mxu0 %v643
    %v714 = vpop.f32.mrf.mxu0
    %v715 = vadd.f32 %v634, %v714
    %v716 = vpop.f32.mrf.mxu0
    %717 = vmatprep.mubr.f32.mxu0 0.0
    %718 = vmatmul.mubr.f32.gmra.mxu0 %v646
    %v719 = vpop.f32.mrf.mxu0
    %v720 = vadd.f32 %v639, %v719
    %v721 = vpop.f32.mrf.mxu0
    %722 = vdwg.mxu0
    %723 = vrot.lane.b32.xlu0 %v226, 112
    %v724 = vpop.permute.xlu0 %723
    %725 = vrot.lane.b32.xlu0 %v231, 112
    %v726 = vpop.permute.xlu0 %725
    %727 = vrot.lane.b32.xlu0 %v226, 80
    %v728 = vpop.permute.xlu0 %727
    %729 = vrot.lane.b32.xlu0 %v231, 80
    %v730 = vpop.permute.xlu0 %729
    %v731 = vsel %vm325, %v724, 0
    %v733 = vsel %vm325, %v726, 0
    %v735 = vsel %vm325, %v728, 0
    %v737 = vsel %vm325, %v730, 0
    %739 = vmatprep.subr.mxu0 0.0
    %740 = vmatpush1.xpose.msra.mxu0 0.0
    %741 = vmatprep.subr.mxu0 0.0
    %742 = vmatpush1.xpose.msra.mxu0 0.0
    %743 = vmatprep.subr.mxu0 0.0
    %744 = vmatpush1.xpose.msra.mxu0 0.0
    %745 = vmatprep.subr.mxu0 0.0
    %746 = vmatpush1.xpose.msra.mxu0 0.0
    %747 = vmatprep.subr.mxu0 0.0
    %748 = vmatpush1.xpose.msra.mxu0 0.0
    %749 = vmatprep.subr.mxu0 0.0
    %750 = vmatpush1.xpose.msra.mxu0 0.0
    %751 = vmatprep.subr.mxu0 0.0
    %752 = vmatpush1.xpose.msra.mxu0 0.0
    %753 = vmatprep.subr.mxu0 0.0
    %754 = vmatpush1.xpose.msra.mxu0 0.0
    %755 = vmatprep.subr.mxu0 0.0
    %756 = vmatpush1.xpose.msra.mxu0 0.0
    %757 = vmatprep.subr.mxu0 0.0
    %758 = vmatpush1.xpose.msra.mxu0 0.0
    %759 = vmatprep.subr.mxu0 0.0
    %760 = vmatpush1.xpose.msra.mxu0 0.0
    %761 = vmatprep.subr.mxu0 0.0
    %762 = vmatpush1.xpose.msra.mxu0 0.0
    %763 = vmatprep.subr.mxu0 0.0
    %764 = vmatpush1.xpose.msra.mxu0 0.0
    %765 = vmatprep.subr.mxu0 0.0
    %766 = vmatpush1.xpose.msra.mxu0 0.0
    %767 = vmatprep.subr.mxu0 0.0
    %768 = vmatpush1.xpose.msra.mxu0 %v737
    %769 = vmatprep.subr.mxu0 0.0
    %770 = vmatpush1.xpose.msra.mxu0 %v735
    %771 = vmatprep.subr.mxu0 0.0
    %772 = vmatpush2.xpose.msra.mxu0 0.0
    %773 = vmatprep.subr.mxu0 0.0
    %774 = vmatpush2.xpose.msra.mxu0 0.0
    %775 = vmatprep.subr.mxu0 0.0
    %776 = vmatpush2.xpose.msra.mxu0 0.0
    %777 = vmatprep.subr.mxu0 0.0
    %778 = vmatpush2.xpose.msra.mxu0 0.0
    %779 = vmatprep.subr.mxu0 0.0
    %780 = vmatpush2.xpose.msra.mxu0 0.0
    %781 = vmatprep.subr.mxu0 0.0
    %782 = vmatpush2.xpose.msra.mxu0 0.0
    %783 = vmatprep.subr.mxu0 0.0
    %784 = vmatpush2.xpose.msra.mxu0 0.0
    %785 = vmatprep.subr.mxu0 0.0
    %786 = vmatpush2.xpose.msra.mxu0 0.0
    %787 = vmatprep.subr.mxu0 0.0
    %788 = vmatpush2.xpose.msra.mxu0 0.0
    %789 = vmatprep.subr.mxu0 0.0
    %790 = vmatpush2.xpose.msra.mxu0 0.0
    %791 = vmatprep.subr.mxu0 0.0
    %792 = vmatpush2.xpose.msra.mxu0 0.0
    %793 = vmatprep.subr.mxu0 0.0
    %794 = vmatpush2.xpose.msra.mxu0 0.0
    %795 = vmatprep.subr.mxu0 0.0
    %796 = vmatpush2.xpose.msra.mxu0 0.0
    %797 = vmatprep.subr.mxu0 0.0
    %798 = vmatpush2.xpose.msra.mxu0 0.0
    %799 = vmatprep.subr.mxu0 0.0
    %800 = vmatpush2.xpose.msra.mxu0 0.0
    %801 = vmatprep.subr.mxu0 0.0
    %802 = vmatpush2.xpose.msra.mxu0 0.0
    %803 = vmatprep.mubr.f32.mxu0 0.0
    %804 = vmatmul.mubr.f32.gmra.mxu0 %v731
    %v805 = vpop.f32.mrf.mxu0
    %v806 = vadd.f32 0.0, %v805
    %v807 = vpop.f32.mrf.mxu0
    %808 = vmatprep.mubr.f32.mxu0 0.0
    %809 = vmatmul.mubr.f32.gmra.mxu0 %v733
    %v810 = vpop.f32.mrf.mxu0
    %v811 = vadd.f32 0.0, %v810
    %v812 = vpop.f32.mrf.mxu0
    %813 = vdwg.mxu0
    %v814 = vmul.f32 %v806, 0.35355338
    %v815 = vmul.f32 %v811, 0.35355338
    %v816 = vadd.f32 %v814, %v317
    %v817 = vadd.f32 %v815, %v318
    %v818 = vsel %vm413, %v816, -inf
    %819 = vmax.xlane.f32.xlu0 %v818
    %v820 = vpop.xlane.xlu0 %819
    %v821 = vsel %vm413, %v817, -inf
    %822 = vmax.xlane.f32.xlu0 %v821
    %v823 = vpop.xlane.xlu0 %822
    %v824 = vsub.f32 %v816, %v820
    %v825 = vsub.f32 %v817, %v823
    %v826 = vmul.f32 %v824, 1.442695
    %v827 = vpow.pop %v826
    %v828 = vmul.f32 %v825, 1.442695
    %v829 = vpow.pop %v828
    %v830 = vsel %vm413, %v827, 0.0
    %831 = vadd.xlane.f32.xlu0 %v830
    %v832 = vpop.xlane.xlu0 %831
    %v833 = vsel %vm413, %v829, 0.0
    %834 = vadd.xlane.f32.xlu0 %v833
    %v835 = vpop.xlane.xlu0 %834
    %v836 = vrcp.pop %v832
    %v837 = vrcp.pop %v835
    %v838 = vmul.f32 %v827, %v836
    %v839 = vmul.f32 %v829, %v837
    %840 = vrot.lane.b32.xlu0 %v309, 64
    %v841 = vpop.permute.xlu0 %840
    %842 = vrot.lane.b32.xlu0 %v314, 64
    %v843 = vpop.permute.xlu0 %842
    %v847 = vsel %vm413, %v838, 0
    %v850 = vsel %vm413, %v839, 0
    %852 = vmatprep.subr.mxu0 0.0
    %853 = vmatpush1.msra.mxu0 0.0
    %854 = vmatprep.subr.mxu0 0.0
    %855 = vmatpush1.msra.mxu0 0.0
    %856 = vmatprep.subr.mxu0 0.0
    %857 = vmatpush1.msra.mxu0 0.0
    %858 = vmatprep.subr.mxu0 0.0
    %859 = vmatpush1.msra.mxu0 0.0
    %860 = vmatprep.subr.mxu0 0.0
    %861 = vmatpush1.msra.mxu0 0.0
    %862 = vmatprep.subr.mxu0 0.0
    %863 = vmatpush1.msra.mxu0 0.0
    %864 = vmatprep.subr.mxu0 0.0
    %865 = vmatpush1.msra.mxu0 0.0
    %866 = vmatprep.subr.mxu0 0.0
    %867 = vmatpush1.msra.mxu0 0.0
    %868 = vmatprep.subr.mxu0 0.0
    %869 = vmatpush1.msra.mxu0 0.0
    %870 = vmatprep.subr.mxu0 0.0
    %871 = vmatpush1.msra.mxu0 0.0
    %872 = vmatprep.subr.mxu0 0.0
    %873 = vmatpush1.msra.mxu0 0.0
    %874 = vmatprep.subr.mxu0 0.0
    %875 = vmatpush1.msra.mxu0 0.0
    %876 = vmatprep.subr.mxu0 0.0
    %877 = vmatpush1.msra.mxu0 0.0
    %878 = vmatprep.subr.mxu0 0.0
    %879 = vmatpush1.msra.mxu0 0.0
    %880 = vmatprep.subr.mxu0 0.0
    %881 = vmatpush1.msra.mxu0 %v843
    %882 = vmatprep.subr.mxu0 0.0
    %883 = vmatpush1.msra.mxu0 %v841
    %884 = vmatprep.subr.mxu0 0.0
    %885 = vmatpush2.msra.mxu0 0.0
    %886 = vmatprep.subr.mxu0 0.0
    %887 = vmatpush2.msra.mxu0 0.0
    %888 = vmatprep.subr.mxu0 0.0
    %889 = vmatpush2.msra.mxu0 0.0
    %890 = vmatprep.subr.mxu0 0.0
    %891 = vmatpush2.msra.mxu0 0.0
    %892 = vmatprep.subr.mxu0 0.0
    %893 = vmatpush2.msra.mxu0 0.0
    %894 = vmatprep.subr.mxu0 0.0
    %895 = vmatpush2.msra.mxu0 0.0
    %896 = vmatprep.subr.mxu0 0.0
    %897 = vmatpush2.msra.mxu0 0.0
    %898 = vmatprep.subr.mxu0 0.0
    %899 = vmatpush2.msra.mxu0 0.0
    %900 = vmatprep.subr.mxu0 0.0
    %901 = vmatpush2.msra.mxu0 0.0
    %902 = vmatprep.subr.mxu0 0.0
    %903 = vmatpush2.msra.mxu0 0.0
    %904 = vmatprep.subr.mxu0 0.0
    %905 = vmatpush2.msra.mxu0 0.0
    %906 = vmatprep.subr.mxu0 0.0
    %907 = vmatpush2.msra.mxu0 0.0
    %908 = vmatprep.subr.mxu0 0.0
    %909 = vmatpush2.msra.mxu0 0.0
    %910 = vmatprep.subr.mxu0 0.0
    %911 = vmatpush2.msra.mxu0 0.0
    %912 = vmatprep.subr.mxu0 0.0
    %913 = vmatpush2.msra.mxu0 0.0
    %914 = vmatprep.subr.mxu0 0.0
    %915 = vmatpush2.msra.mxu0 0.0
    %916 = vmatprep.mubr.f32.mxu0 0.0
    %917 = vmatmul.mubr.f32.gmra.mxu0 %v847
    %v918 = vpop.f32.mrf.mxu0
    %v919 = vadd.f32 0.0, %v918
    %v920 = vpop.f32.mrf.mxu0
    %921 = vmatprep.mubr.f32.mxu0 0.0
    %922 = vmatmul.mubr.f32.gmra.mxu0 %v850
    %v923 = vpop.f32.mrf.mxu0
    %v924 = vadd.f32 0.0, %v923
    %v925 = vpop.f32.mrf.mxu0
    %926 = vdwg.mxu0
    %v927 = vadd.f32 %v715, %v919
    %v928 = vadd.f32 %v720, %v924
    %929 = vrot.lane.b32.xlu0 %v226, 104
    %v930 = vpop.permute.xlu0 %929
    %931 = vrot.lane.b32.xlu0 %v231, 104
    %v932 = vpop.permute.xlu0 %931
    %933 = vrot.lane.b32.xlu0 %v226, 72
    %v934 = vpop.permute.xlu0 %933
    %935 = vrot.lane.b32.xlu0 %v231, 72
    %v936 = vpop.permute.xlu0 %935
    %v937 = vsel %vm325, %v930, 0
    %v939 = vsel %vm325, %v932, 0
    %v941 = vsel %vm325, %v934, 0
    %v943 = vsel %vm325, %v936, 0
    %945 = vmatprep.subr.mxu0 0.0
    %946 = vmatpush1.xpose.msra.mxu0 0.0
    %947 = vmatprep.subr.mxu0 0.0
    %948 = vmatpush1.xpose.msra.mxu0 0.0
    %949 = vmatprep.subr.mxu0 0.0
    %950 = vmatpush1.xpose.msra.mxu0 0.0
    %951 = vmatprep.subr.mxu0 0.0
    %952 = vmatpush1.xpose.msra.mxu0 0.0
    %953 = vmatprep.subr.mxu0 0.0
    %954 = vmatpush1.xpose.msra.mxu0 0.0
    %955 = vmatprep.subr.mxu0 0.0
    %956 = vmatpush1.xpose.msra.mxu0 0.0
    %957 = vmatprep.subr.mxu0 0.0
    %958 = vmatpush1.xpose.msra.mxu0 0.0
    %959 = vmatprep.subr.mxu0 0.0
    %960 = vmatpush1.xpose.msra.mxu0 0.0
    %961 = vmatprep.subr.mxu0 0.0
    %962 = vmatpush1.xpose.msra.mxu0 0.0
    %963 = vmatprep.subr.mxu0 0.0
    %964 = vmatpush1.xpose.msra.mxu0 0.0
    %965 = vmatprep.subr.mxu0 0.0
    %966 = vmatpush1.xpose.msra.mxu0 0.0
    %967 = vmatprep.subr.mxu0 0.0
    %968 = vmatpush1.xpose.msra.mxu0 0.0
    %969 = vmatprep.subr.mxu0 0.0
    %970 = vmatpush1.xpose.msra.mxu0 0.0
    %971 = vmatprep.subr.mxu0 0.0
    %972 = vmatpush1.xpose.msra.mxu0 0.0
    %973 = vmatprep.subr.mxu0 0.0
    %974 = vmatpush1.xpose.msra.mxu0 %v943
    %975 = vmatprep.subr.mxu0 0.0
    %976 = vmatpush1.xpose.msra.mxu0 %v941
    %977 = vmatprep.subr.mxu0 0.0
    %978 = vmatpush2.xpose.msra.mxu0 0.0
    %979 = vmatprep.subr.mxu0 0.0
    %980 = vmatpush2.xpose.msra.mxu0 0.0
    %981 = vmatprep.subr.mxu0 0.0
    %982 = vmatpush2.xpose.msra.mxu0 0.0
    %983 = vmatprep.subr.mxu0 0.0
    %984 = vmatpush2.xpose.msra.mxu0 0.0
    %985 = vmatprep.subr.mxu0 0.0
    %986 = vmatpush2.xpose.msra.mxu0 0.0
    %987 = vmatprep.subr.mxu0 0.0
    %988 = vmatpush2.xpose.msra.mxu0 0.0
    %989 = vmatprep.subr.mxu0 0.0
    %990 = vmatpush2.xpose.msra.mxu0 0.0
    %991 = vmatprep.subr.mxu0 0.0
    %992 = vmatpush2.xpose.msra.mxu0 0.0
    %993 = vmatprep.subr.mxu0 0.0
    %994 = vmatpush2.xpose.msra.mxu0 0.0
    %995 = vmatprep.subr.mxu0 0.0
    %996 = vmatpush2.xpose.msra.mxu0 0.0
    %997 = vmatprep.subr.mxu0 0.0
    %998 = vmatpush2.xpose.msra.mxu0 0.0
    %999 = vmatprep.subr.mxu0 0.0
    %1000 = vmatpush2.xpose.msra.mxu0 0.0
    %1001 = vmatprep.subr.mxu0 0.0
    %1002 = vmatpush2.xpose.msra.mxu0 0.0
    %1003 = vmatprep.subr.mxu0 0.0
    %1004 = vmatpush2.xpose.msra.mxu0 0.0
    %1005 = vmatprep.subr.mxu0 0.0
    %1006 = vmatpush2.xpose.msra.mxu0 0.0
    %1007 = vmatprep.subr.mxu0 0.0
    %1008 = vmatpush2.xpose.msra.mxu0 0.0
    %1009 = vmatprep.mubr.f32.mxu0 0.0
    %1010 = vmatmul.mubr.f32.gmra.mxu0 %v937
    %v1011 = vpop.f32.mrf.mxu0
    %v1012 = vadd.f32 0.0, %v1011
    %v1013 = vpop.f32.mrf.mxu0
    %1014 = vmatprep.mubr.f32.mxu0 0.0
    %1015 = vmatmul.mubr.f32.gmra.mxu0 %v939
    %v1016 = vpop.f32.mrf.mxu0
    %v1017 = vadd.f32 0.0, %v1016
    %v1018 = vpop.f32.mrf.mxu0
    %1019 = vdwg.mxu0
    %v1020 = vmul.f32 %v1012, 0.35355338
    %v1021 = vmul.f32 %v1017, 0.35355338
    %v1022 = vadd.f32 %v1020, %v317
    %v1023 = vadd.f32 %v1021, %v318
    %v1024 = vsel %vm413, %v1022, -inf
    %1025 = vmax.xlane.f32.xlu0 %v1024
    %v1026 = vpop.xlane.xlu0 %1025
    %v1027 = vsel %vm413, %v1023, -inf
    %1028 = vmax.xlane.f32.xlu0 %v1027
    %v1029 = vpop.xlane.xlu0 %1028
    %v1030 = vsub.f32 %v1022, %v1026
    %v1031 = vsub.f32 %v1023, %v1029
    %v1032 = vmul.f32 %v1030, 1.442695
    %v1033 = vpow.pop %v1032
    %v1034 = vmul.f32 %v1031, 1.442695
    %v1035 = vpow.pop %v1034
    %v1036 = vsel %vm413, %v1033, 0.0
    %1037 = vadd.xlane.f32.xlu0 %v1036
    %v1038 = vpop.xlane.xlu0 %1037
    %v1039 = vsel %vm413, %v1035, 0.0
    %1040 = vadd.xlane.f32.xlu0 %v1039
    %v1041 = vpop.xlane.xlu0 %1040
    %v1042 = vrcp.pop %v1038
    %v1043 = vrcp.pop %v1041
    %v1044 = vmul.f32 %v1033, %v1042
    %v1045 = vmul.f32 %v1035, %v1043
    %1046 = vrot.lane.b32.xlu0 %v309, 32
    %v1047 = vpop.permute.xlu0 %1046
    %1048 = vrot.lane.b32.xlu0 %v314, 32
    %v1049 = vpop.permute.xlu0 %1048
    %v1053 = vsel %vm413, %v1044, 0
    %v1056 = vsel %vm413, %v1045, 0
    %1058 = vmatprep.subr.mxu0 0.0
    %1059 = vmatpush1.msra.mxu0 0.0
    %1060 = vmatprep.subr.mxu0 0.0
    %1061 = vmatpush1.msra.mxu0 0.0
    %1062 = vmatprep.subr.mxu0 0.0
    %1063 = vmatpush1.msra.mxu0 0.0
    %1064 = vmatprep.subr.mxu0 0.0
    %1065 = vmatpush1.msra.mxu0 0.0
    %1066 = vmatprep.subr.mxu0 0.0
    %1067 = vmatpush1.msra.mxu0 0.0
    %1068 = vmatprep.subr.mxu0 0.0
    %1069 = vmatpush1.msra.mxu0 0.0
    %1070 = vmatprep.subr.mxu0 0.0
    %1071 = vmatpush1.msra.mxu0 0.0
    %1072 = vmatprep.subr.mxu0 0.0
    %1073 = vmatpush1.msra.mxu0 0.0
    %1074 = vmatprep.subr.mxu0 0.0
    %1075 = vmatpush1.msra.mxu0 0.0
    %1076 = vmatprep.subr.mxu0 0.0
    %1077 = vmatpush1.msra.mxu0 0.0
    %1078 = vmatprep.subr.mxu0 0.0
    %1079 = vmatpush1.msra.mxu0 0.0
    %1080 = vmatprep.subr.mxu0 0.0
    %1081 = vmatpush1.msra.mxu0 0.0
    %1082 = vmatprep.subr.mxu0 0.0
    %1083 = vmatpush1.msra.mxu0 0.0
    %1084 = vmatprep.subr.mxu0 0.0
    %1085 = vmatpush1.msra.mxu0 0.0
    %1086 = vmatprep.subr.mxu0 0.0
    %1087 = vmatpush1.msra.mxu0 %v1049
    %1088 = vmatprep.subr.mxu0 0.0
    %1089 = vmatpush1.msra.mxu0 %v1047
    %1090 = vmatprep.subr.mxu0 0.0
    %1091 = vmatpush2.msra.mxu0 0.0
    %1092 = vmatprep.subr.mxu0 0.0
    %1093 = vmatpush2.msra.mxu0 0.0
    %1094 = vmatprep.subr.mxu0 0.0
    %1095 = vmatpush2.msra.mxu0 0.0
    %1096 = vmatprep.subr.mxu0 0.0
    %1097 = vmatpush2.msra.mxu0 0.0
    %1098 = vmatprep.subr.mxu0 0.0
    %1099 = vmatpush2.msra.mxu0 0.0
    %1100 = vmatprep.subr.mxu0 0.0
    %1101 = vmatpush2.msra.mxu0 0.0
    %1102 = vmatprep.subr.mxu0 0.0
    %1103 = vmatpush2.msra.mxu0 0.0
    %1104 = vmatprep.subr.mxu0 0.0
    %1105 = vmatpush2.msra.mxu0 0.0
    %1106 = vmatprep.subr.mxu0 0.0
    %1107 = vmatpush2.msra.mxu0 0.0
    %1108 = vmatprep.subr.mxu0 0.0
    %1109 = vmatpush2.msra.mxu0 0.0
    %1110 = vmatprep.subr.mxu0 0.0
    %1111 = vmatpush2.msra.mxu0 0.0
    %1112 = vmatprep.subr.mxu0 0.0
    %1113 = vmatpush2.msra.mxu0 0.0
    %1114 = vmatprep.subr.mxu0 0.0
    %1115 = vmatpush2.msra.mxu0 0.0
    %1116 = vmatprep.subr.mxu0 0.0
    %1117 = vmatpush2.msra.mxu0 0.0
    %1118 = vmatprep.subr.mxu0 0.0
    %1119 = vmatpush2.msra.mxu0 0.0
    %1120 = vmatprep.subr.mxu0 0.0
    %1121 = vmatpush2.msra.mxu0 0.0
    %1122 = vmatprep.mubr.f32.mxu0 0.0
    %1123 = vmatmul.mubr.f32.gmra.mxu0 %v1053
    %v1124 = vpop.f32.mrf.mxu0
    %v1125 = vadd.f32 0.0, %v1124
    %v1126 = vpop.f32.mrf.mxu0
    %1127 = vmatprep.mubr.f32.mxu0 0.0
    %1128 = vmatmul.mubr.f32.gmra.mxu0 %v1056
    %v1129 = vpop.f32.mrf.mxu0
    %v1130 = vadd.f32 0.0, %v1129
    %v1131 = vpop.f32.mrf.mxu0
    %1132 = vdwg.mxu0
    %v1133 = vadd.f32 %v927, %v1125
    %v1134 = vadd.f32 %v928, %v1130
    %v1135 = vlaneseq
    %v1136 = vshrl.u32 %v1135, 7
    %v1137 = vsub.s32 2, %v1136
    %v1138 = vrot.slane %v26, %v1137
    %v1139 = vadd.f32 %v1133, %v1138
    %v1140 = vadd.f32 %v1134, %v1138
    %v1141 = vadd.f32 %v136, %v1139
    %v1142 = vadd.f32 %v141, %v1140
    %v1143 = vsel %vm152, %v1141, 0.0
    %1144 = vadd.xlane.f32.xlu0 %v1143
    %v1145 = vpop.xlane.xlu0 %1144
    %v1146 = vsel %vm152, %v1142, 0.0
    %1147 = vadd.xlane.f32.xlu0 %v1146
    %v1148 = vpop.xlane.xlu0 %1147
    %v1149 = vrcp.pop 32.0
    %v1150 = vmul.f32 %v1145, %v1149
    %v1151 = vmul.f32 %v1148, %v1149
    %v1152 = vsub.f32 %v1141, %v1150
    %v1153 = vsub.f32 %v1142, %v1151
    %v1154 = vmul.f32 %v1152, %v1152
    %v1155 = vmul.f32 %v1153, %v1153
    %v1156 = vsel %vm152, %v1154, 0.0
    %1157 = vadd.xlane.f32.xlu0 %v1156
    %v1158 = vpop.xlane.xlu0 %1157
    %v1159 = vsel %vm152, %v1155, 0.0
    %1160 = vadd.xlane.f32.xlu0 %v1159
    %v1161 = vpop.xlane.xlu0 %1160
    %v1162 = vmul.f32 %v1158, %v1149
    %v1163 = vmul.f32 %v1161, %v1149
    %v1164 = vadd.f32 %v1162, 1e-05
    %v1165 = vadd.f32 %v1163, 1e-05
    %v1166 = vrsqrt.pop %v1164
    %v1167 = vrsqrt.pop %v1165
    %v1168 = vmul.f32 %v1152, %v1166
    %v1169 = vmul.f32 %v1153, %v1167
    %v1170 = vlaneseq
    %v1171 = vshrl.u32 %v1170, 7
    %v1172 = vsub.s32 3, %v1171
    %v1173 = vrot.slane %v26, %v1172
    %v1174 = vmul.f32 %v1168, %v1173
    %v1175 = vmul.f32 %v1169, %v1173
    %v1176 = vlaneseq
    %v1177 = vshrl.u32 %v1176, 7
    %v1178 = vsub.s32 4, %v1177
    %v1179 = vrot.slane %v26, %v1178
    %v1180 = vadd.f32 %v1174, %v1179
    %v1181 = vadd.f32 %v1175, %v1179
    %v1182 = vld [vmem:[#allocation2 + $0x88] sm:$0xff]
    %v1183 = vld [vmem:[#allocation2 + $0x90] sm:$0xff]
    %v1184 = vld [vmem:[#allocation2 + $0x98] sm:$0xff]
    %v1185 = vld [vmem:[#allocation2 + $0xa0] sm:$0xff]
    %v1186 = vld [vmem:[#allocation2 + $0xa8] sm:$0xff]
    %v1187 = vld [vmem:[#allocation2 + $0xb0] sm:$0xff]
    %v1188 = vld [vmem:[#allocation2 + $0xb8] sm:$0xff]
    %v1189 = vld [vmem:[#allocation2 + $0xc0] sm:$0xff]
    %v1190 = vld [vmem:[#allocation2 + $0xc8] sm:$0xff]
    %v1191 = vld [vmem:[#allocation2 + $0xd0] sm:$0xff]
    %v1192 = vld [vmem:[#allocation2 + $0xd8] sm:$0xff]
    %v1193 = vld [vmem:[#allocation2 + $0xe0] sm:$0xff]
    %v1194 = vlaneseq
    %v1195 = vshrl.u32 %v1194, 7
    %v1196 = vsub.s32 7, %v1195
    %v1197 = vrot.slane %v26, %v1196
    %v1199 = vsel %vm152, %v1180, 0
    %v1202 = vsel %vm152, %v1181, 0
    %1204 = vmatprep.subr.mxu0 0.0
    %1205 = vmatpush1.msra.mxu0 0.0
    %1206 = vmatprep.subr.mxu0 0.0
    %1207 = vmatpush1.msra.mxu0 0.0
    %1208 = vmatprep.subr.mxu0 0.0
    %1209 = vmatpush1.msra.mxu0 0.0
    %1210 = vmatprep.subr.mxu0 0.0
    %1211 = vmatpush1.msra.mxu0 0.0
    %1212 = vmatprep.subr.mxu0 0.0
    %1213 = vmatpush1.msra.mxu0 0.0
    %1214 = vmatprep.subr.mxu0 0.0
    %1215 = vmatpush1.msra.mxu0 0.0
    %1216 = vmatprep.subr.mxu0 0.0
    %1217 = vmatpush1.msra.mxu0 0.0
    %1218 = vmatprep.subr.mxu0 0.0
    %1219 = vmatpush1.msra.mxu0 0.0
    %1220 = vmatprep.subr.mxu0 0.0
    %1221 = vmatpush1.msra.mxu0 0.0
    %1222 = vmatprep.subr.mxu0 0.0
    %1223 = vmatpush1.msra.mxu0 0.0
    %1224 = vmatprep.subr.mxu0 0.0
    %1225 = vmatpush1.msra.mxu0 0.0
    %1226 = vmatprep.subr.mxu0 0.0
    %1227 = vmatpush1.msra.mxu0 0.0
    %1228 = vmatprep.subr.mxu0 0.0
    %1229 = vmatpush1.msra.mxu0 %v1185
    %1230 = vmatprep.subr.mxu0 0.0
    %1231 = vmatpush1.msra.mxu0 %v1184
    %1232 = vmatprep.subr.mxu0 0.0
    %1233 = vmatpush1.msra.mxu0 %v1183
    %1234 = vmatprep.subr.mxu0 0.0
    %1235 = vmatpush1.msra.mxu0 %v1182
    %1236 = vmatprep.subr.mxu0 0.0
    %1237 = vmatpush2.msra.mxu0 0.0
    %1238 = vmatprep.subr.mxu0 0.0
    %1239 = vmatpush2.msra.mxu0 0.0
    %1240 = vmatprep.subr.mxu0 0.0
    %1241 = vmatpush2.msra.mxu0 0.0
    %1242 = vmatprep.subr.mxu0 0.0
    %1243 = vmatpush2.msra.mxu0 0.0
    %1244 = vmatprep.subr.mxu0 0.0
    %1245 = vmatpush2.msra.mxu0 0.0
    %1246 = vmatprep.subr.mxu0 0.0
    %1247 = vmatpush2.msra.mxu0 0.0
    %1248 = vmatprep.subr.mxu0 0.0
    %1249 = vmatpush2.msra.mxu0 0.0
    %1250 = vmatprep.subr.mxu0 0.0
    %1251 = vmatpush2.msra.mxu0 0.0
    %1252 = vmatprep.subr.mxu0 0.0
    %1253 = vmatpush2.msra.mxu0 0.0
    %1254 = vmatprep.subr.mxu0 0.0
    %1255 = vmatpush2.msra.mxu0 0.0
    %1256 = vmatprep.subr.mxu0 0.0
    %1257 = vmatpush2.msra.mxu0 0.0
    %1258 = vmatprep.subr.mxu0 0.0
    %1259 = vmatpush2.msra.mxu0 0.0
    %1260 = vmatprep.subr.mxu0 0.0
    %1261 = vmatpush2.msra.mxu0 0.0
    %1262 = vmatprep.subr.mxu0 0.0
    %1263 = vmatpush2.msra.mxu0 0.0
    %1264 = vmatprep.subr.mxu0 0.0
    %1265 = vmatpush2.msra.mxu0 0.0
    %1266 = vmatprep.subr.mxu0 0.0
    %1267 = vmatpush2.msra.mxu0 0.0
    %1268 = vmatprep.mubr.f32.mxu0 0.0
    %1269 = vmatmul.mubr.f32.gmra.mxu0 %v1199
    %v1270 = vpop.f32.mrf.mxu0
    %v1271 = vadd.f32 %v1197, %v1270
    %v1272 = vpop.f32.mrf.mxu0
    %1273 = vmatprep.mubr.f32.mxu0 0.0
    %1274 = vmatmul.mubr.f32.gmra.mxu0 %v1202
    %v1275 = vpop.f32.mrf.mxu0
    %v1276 = vadd.f32 %v1197, %v1275
    %v1277 = vpop.f32.mrf.mxu0
    %1278 = vdwg.mxu0
    %v1279 = vmax.f32 %v1271, 0.0
    %v1280 = vmax.f32 %v1276, 0.0
    %v1281 = vlaneseq
    %v1282 = vshrl.u32 %v1281, 7
    %v1283 = vsub.s32 0, %v1282
    %v1284 = vrot.slane %v27, %v1283
    %vm1285 = vcmask 523264
    %v1287 = vsel %vm1285, %v1279, 0
    %v1290 = vsel %vm1285, %v1280, 0
    %1292 = vmatprep.subr.mxu0 0.0
    %1293 = vmatpush1.msra.mxu0 0.0
    %1294 = vmatprep.subr.mxu0 0.0
    %1295 = vmatpush1.msra.mxu0 0.0
    %1296 = vmatprep.subr.mxu0 0.0
    %1297 = vmatpush1.msra.mxu0 0.0
    %1298 = vmatprep.subr.mxu0 0.0
    %1299 = vmatpush1.msra.mxu0 0.0
    %1300 = vmatprep.subr.mxu0 0.0
    %1301 = vmatpush1.msra.mxu0 0.0
    %1302 = vmatprep.subr.mxu0 0.0
    %1303 = vmatpush1.msra.mxu0 0.0
    %1304 = vmatprep.subr.mxu0 0.0
    %1305 = vmatpush1.msra.mxu0 0.0
    %1306 = vmatprep.subr.mxu0 0.0
    %1307 = vmatpush1.msra.mxu0 0.0
    %1308 = vmatprep.subr.mxu0 0.0
    %1309 = vmatpush1.msra.mxu0 %v1193
    %1310 = vmatprep.subr.mxu0 0.0
    %1311 = vmatpush1.msra.mxu0 %v1192
    %1312 = vmatprep.subr.mxu0 0.0
    %1313 = vmatpush1.msra.mxu0 %v1191
    %1314 = vmatprep.subr.mxu0 0.0
    %1315 = vmatpush1.msra.mxu0 %v1190
    %1316 = vmatprep.subr.mxu0 0.0
    %1317 = vmatpush1.msra.mxu0 %v1189
    %1318 = vmatprep.subr.mxu0 0.0
    %1319 = vmatpush1.msra.mxu0 %v1188
    %1320 = vmatprep.subr.mxu0 0.0
    %1321 = vmatpush1.msra.mxu0 %v1187
    %1322 = vmatprep.subr.mxu0 0.0
    %1323 = vmatpush1.msra.mxu0 %v1186
    %1324 = vmatprep.subr.mxu0 0.0
    %1325 = vmatpush2.msra.mxu0 0.0
    %1326 = vmatprep.subr.mxu0 0.0
    %1327 = vmatpush2.msra.mxu0 0.0
    %1328 = vmatprep.subr.mxu0 0.0
    %1329 = vmatpush2.msra.mxu0 0.0
    %1330 = vmatprep.subr.mxu0 0.0
    %1331 = vmatpush2.msra.mxu0 0.0
    %1332 = vmatprep.subr.mxu0 0.0
    %1333 = vmatpush2.msra.mxu0 0.0
    %1334 = vmatprep.subr.mxu0 0.0
    %1335 = vmatpush2.msra.mxu0 0.0
    %1336 = vmatprep.subr.mxu0 0.0
    %1337 = vmatpush2.msra.mxu0 0.0
    %1338 = vmatprep.subr.mxu0 0.0
    %1339 = vmatpush2.msra.mxu0 0.0
    %1340 = vmatprep.subr.mxu0 0.0
    %1341 = vmatpush2.msra.mxu0 0.0
    %1342 = vmatprep.subr.mxu0 0.0
    %1343 = vmatpush2.msra.mxu0 0.0
    %1344 = vmatprep.subr.mxu0 0.0
    %1345 = vmatpush2.msra.mxu0 0.0
    %1346 = vmatprep.subr.mxu0 0.0
    %1347 = vmatpush2.msra.mxu0 0.0
    %1348 = vmatprep.subr.mxu0 0.0
    %1349 = vmatpush2.msra.mxu0 0.0
    %1350 = vmatprep.subr.mxu0 0.0
    %1351 = vmatpush2.msra.mxu0 0.0
    %1352 = vmatprep.subr.mxu0 0.0
    %1353 = vmatpush2.msra.mxu0 0.0
    %1354 = vmatprep.subr.mxu0 0.0
    %1355 = vmatpush2.msra.mxu0 0.0
    %1356 = vmatprep.mubr.f32.mxu0 0.0
    %1357 = vmatmul.mubr.f32.gmra.mxu0 %v1287
    %v1358 = vpop.f32.mrf.mxu0
    %v1359 = vadd.f32 %v1284, %v1358
    %v1360 = vpop.f32.mrf.mxu0
    %1361 = vmatprep.mubr.f32.mxu0 0.0
    %1362 = vmatmul.mubr.f32.gmra.mxu0 %v1290
    %v1363 = vpop.f32.mrf.mxu0
    %v1364 = vadd.f32 %v1284, %v1363
    %v1365 = vpop.f32.mrf.mxu0
    %1366 = vdwg.mxu0
    %v1367 = vadd.f32 %v1180, %v1359
    %v1368 = vadd.f32 %v1181, %v1364
    %v1369 = vsel %vm152, %v1367, 0.0
    %1370 = vadd.xlane.f32.xlu0 %v1369
    %v1371 = vpop.xlane.xlu0 %1370
    %v1372 = vsel %vm152, %v1368, 0.0
    %1373 = vadd.xlane.f32.xlu0 %v1372
    %v1374 = vpop.xlane.xlu0 %1373
    %v1375 = vmul.f32 %v1371, %v1149
    %v1376 = vmul.f32 %v1374, %v1149
    %v1377 = vsub.f32 %v1367, %v1375
    %v1378 = vsub.f32 %v1368, %v1376
    %v1379 = vmul.f32 %v1377, %v1377
    %v1380 = vmul.f32 %v1378, %v1378
    %v1381 = vsel %vm152, %v1379, 0.0
    %1382 = vadd.xlane.f32.xlu0 %v1381
    %v1383 = vpop.xlane.xlu0 %1382
    %v1384 = vsel %vm152, %v1380, 0.0
    %1385 = vadd.xlane.f32.xlu0 %v1384
    %v1386 = vpop.xlane.xlu0 %1385
    %v1387 = vmul.f32 %v1383, %v1149
    %v1388 = vmul.f32 %v1386, %v1149
    %v1389 = vadd.f32 %v1387, 1e-05
    %v1390 = vadd.f32 %v1388, 1e-05
    %v1391 = vrsqrt.pop %v1389
    %v1392 = vrsqrt.pop %v1390
    %v1393 = vmul.f32 %v1377, %v1391
    %v1394 = vmul.f32 %v1378, %v1392
    %v1395 = vlaneseq
    %v1396 = vshrl.u32 %v1395, 7
    %v1397 = vsub.s32 5, %v1396
    %v1398 = vrot.slane %v26, %v1397
    %v1399 = vmul.f32 %v1393, %v1398
    %v1400 = vmul.f32 %v1394, %v1398
    %v1401 = vlaneseq
    %v1402 = vshrl.u32 %v1401, 7
    %v1403 = vsub.s32 6, %v1402
    %v1404 = vrot.slane %v26, %v1403
    %v1405 = vadd.f32 %v1399, %v1404
    %v1406 = vadd.f32 %v1400, %v1404
    %v1407 = vld [vmem:[#allocation2 + $0xe8] sm:$0xff]
    %v1408 = vld [vmem:[#allocation2 + $0xf0] sm:$0xff]
    %v1409 = vld [vmem:[#allocation2 + $0xf8] sm:$0xff]
    %v1410 = vld [vmem:[#allocation2 + $0x100] sm:$0xff]
    %v1411 = vld [vmem:[#allocation2 + $0x108] sm:$0xff]
    %v1412 = vld [vmem:[#allocation2 + $0x110] sm:$0xff]
    %v1413 = vld [vmem:[#allocation2 + $0x118] sm:$0xff]
    %v1414 = vld [vmem:[#allocation2 + $0x120] sm:$0xff]
    %v1415 = vld [vmem:[#allocation2 + $0x128] sm:$0xff]
    %v1416 = vld [vmem:[#allocation2 + $0x130] sm:$0xff]
    %v1417 = vld [vmem:[#allocation2 + $0x138] sm:$0xff]
    %v1418 = vld [vmem:[#allocation2 + $0x140] sm:$0xff]
    %v1419 = vld [vmem:[#allocation2 + $0x148] sm:$0xff]
    %v1420 = vld [vmem:[#allocation2 + $0x150] sm:$0xff]
    %v1421 = vld [vmem:[#allocation2 + $0x158] sm:$0xff]
    %v1422 = vld [vmem:[#allocation2 + $0x160] sm:$0xff]
    %v1423 = vld [vmem:[#allocation2 + $0x168] sm:$0xff]
    %v1424 = vld [vmem:[#allocation2 + $0x170] sm:$0xff]
    %v1425 = vld [vmem:[#allocation2 + $0x178] sm:$0xff]
    %v1426 = vld [vmem:[#allocation2 + $0x180] sm:$0xff]
    %v1427 = vlaneseq
    %v1428 = vshrl.u32 %v1427, 7
    %v1429 = vsub.s32 1, %v1428
    %v1430 = vrot.slane %v27, %v1429
    %v1432 = vsel %vm152, %v1405, 0
    %v1435 = vsel %vm152, %v1406, 0
    %1437 = vmatprep.subr.mxu0 0.0
    %1438 = vmatpush1.msra.mxu0 0.0
    %1439 = vmatprep.subr.mxu0 0.0
    %1440 = vmatpush1.msra.mxu0 0.0
    %1441 = vmatprep.subr.mxu0 0.0
    %1442 = vmatpush1.msra.mxu0 0.0
    %1443 = vmatprep.subr.mxu0 0.0
    %1444 = vmatpush1.msra.mxu0 0.0
    %1445 = vmatprep.subr.mxu0 0.0
    %1446 = vmatpush1.msra.mxu0 0.0
    %1447 = vmatprep.subr.mxu0 0.0
    %1448 = vmatpush1.msra.mxu0 0.0
    %1449 = vmatprep.subr.mxu0 0.0
    %1450 = vmatpush1.msra.mxu0 0.0
    %1451 = vmatprep.subr.mxu0 0.0
    %1452 = vmatpush1.msra.mxu0 0.0
    %1453 = vmatprep.subr.mxu0 0.0
    %1454 = vmatpush1.msra.mxu0 0.0
    %1455 = vmatprep.subr.mxu0 0.0
    %1456 = vmatpush1.msra.mxu0 0.0
    %1457 = vmatprep.subr.mxu0 0.0
    %1458 = vmatpush1.msra.mxu0 0.0
    %1459 = vmatprep.subr.mxu0 0.0
    %1460 = vmatpush1.msra.mxu0 0.0
    %1461 = vmatprep.subr.mxu0 0.0
    %1462 = vmatpush1.msra.mxu0 %v1410
    %1463 = vmatprep.subr.mxu0 0.0
    %1464 = vmatpush1.msra.mxu0 %v1409
    %1465 = vmatprep.subr.mxu0 0.0
    %1466 = vmatpush1.msra.mxu0 %v1408
    %1467 = vmatprep.subr.mxu0 0.0
    %1468 = vmatpush1.msra.mxu0 %v1407
    %1469 = vmatprep.subr.mxu0 0.0
    %1470 = vmatpush2.msra.mxu0 0.0
    %1471 = vmatprep.subr.mxu0 0.0
    %1472 = vmatpush2.msra.mxu0 0.0
    %1473 = vmatprep.subr.mxu0 0.0
    %1474 = vmatpush2.msra.mxu0 0.0
    %1475 = vmatprep.subr.mxu0 0.0
    %1476 = vmatpush2.msra.mxu0 0.0
    %1477 = vmatprep.subr.mxu0 0.0
    %1478 = vmatpush2.msra.mxu0 0.0
    %1479 = vmatprep.subr.mxu0 0.0
    %1480 = vmatpush2.msra.mxu0 0.0
    %1481 = vmatprep.subr.mxu0 0.0
    %1482 = vmatpush2.msra.mxu0 0.0
    %1483 = vmatprep.subr.mxu0 0.0
    %1484 = vmatpush2.msra.mxu0 0.0
    %1485 = vmatprep.subr.mxu0 0.0
    %1486 = vmatpush2.msra.mxu0 0.0
    %1487 = vmatprep.subr.mxu0 0.0
    %1488 = vmatpush2.msra.mxu0 0.0
    %1489 = vmatprep.subr.mxu0 0.0
    %1490 = vmatpush2.msra.mxu0 0.0
    %1491 = vmatprep.subr.mxu0 0.0
    %1492 = vmatpush2.msra.mxu0 0.0
    %1493 = vmatprep.subr.mxu0 0.0
    %1494 = vmatpush2.msra.mxu0 0.0
    %1495 = vmatprep.subr.mxu0 0.0
    %1496 = vmatpush2.msra.mxu0 0.0
    %1497 = vmatprep.subr.mxu0 0.0
    %1498 = vmatpush2.msra.mxu0 0.0
    %1499 = vmatprep.subr.mxu0 0.0
    %1500 = vmatpush2.msra.mxu0 0.0
    %1501 = vmatprep.mubr.f32.mxu0 0.0
    %1502 = vmatmul.mubr.f32.gmra.mxu0 %v1432
    %v1503 = vpop.f32.mrf.mxu0
    %v1504 = vadd.f32 %v1430, %v1503
    %v1505 = vpop.f32.mrf.mxu0
    %1506 = vmatprep.mubr.f32.mxu0 0.0
    %1507 = vmatmul.mubr.f32.gmra.mxu0 %v1435
    %v1508 = vpop.f32.mrf.mxu0
    %v1509 = vadd.f32 %v1430, %v1508
    %v1510 = vpop.f32.mrf.mxu0
    %1511 = vdwg.mxu0
    %v1512 = vmax.f32 %v1504, 0.0
    %v1513 = vmax.f32 %v1509, 0.0
    %v1514 = vlaneseq
    %v1515 = vshrl.u32 %v1514, 7
    %v1516 = vsub.s32 2, %v1515
    %v1517 = vrot.slane %v27, %v1516
    %1518 = vmatprep.subr.mxu0 0.0
    %1519 = vmatpush1.msra.mxu0 %v1426
    %1520 = vmatprep.subr.mxu0 0.0
    %1521 = vmatpush1.msra.mxu0 %v1425
    %1522 = vmatprep.subr.mxu0 0.0
    %1523 = vmatpush1.msra.mxu0 %v1424
    %1524 = vmatprep.subr.mxu0 0.0
    %1525 = vmatpush1.msra.mxu0 %v1423
    %1526 = vmatprep.subr.mxu0 0.0
    %1527 = vmatpush1.msra.mxu0 %v1422
    %1528 = vmatprep.subr.mxu0 0.0
    %1529 = vmatpush1.msra.mxu0 %v1421
    %1530 = vmatprep.subr.mxu0 0.0
    %1531 = vmatpush1.msra.mxu0 %v1420
    %1532 = vmatprep.subr.mxu0 0.0
    %1533 = vmatpush1.msra.mxu0 %v1419
    %1534 = vmatprep.subr.mxu0 0.0
    %1535 = vmatpush1.msra.mxu0 %v1418
    %1536 = vmatprep.subr.mxu0 0.0
    %1537 = vmatpush1.msra.mxu0 %v1417
    %1538 = vmatprep.subr.mxu0 0.0
    %1539 = vmatpush1.msra.mxu0 %v1416
    %1540 = vmatprep.subr.mxu0 0.0
    %1541 = vmatpush1.msra.mxu0 %v1415
    %1542 = vmatprep.subr.mxu0 0.0
    %1543 = vmatpush1.msra.mxu0 %v1414
    %1544 = vmatprep.subr.mxu0 0.0
    %1545 = vmatpush1.msra.mxu0 %v1413
    %1546 = vmatprep.subr.mxu0 0.0
    %1547 = vmatpush1.msra.mxu0 %v1412
    %1548 = vmatprep.subr.mxu0 0.0
    %1549 = vmatpush1.msra.mxu0 %v1411
    %1550 = vmatprep.subr.mxu0 0.0
    %1551 = vmatpush2.msra.mxu0 0.0
    %1552 = vmatprep.subr.mxu0 0.0
    %1553 = vmatpush2.msra.mxu0 0.0
    %1554 = vmatprep.subr.mxu0 0.0
    %1555 = vmatpush2.msra.mxu0 0.0
    %1556 = vmatprep.subr.mxu0 0.0
    %1557 = vmatpush2.msra.mxu0 0.0
    %1558 = vmatprep.subr.mxu0 0.0
    %1559 = vmatpush2.msra.mxu0 0.0
    %1560 = vmatprep.subr.mxu0 0.0
    %1561 = vmatpush2.msra.mxu0 0.0
    %1562 = vmatprep.subr.mxu0 0.0
    %1563 = vmatpush2.msra.mxu0 0.0
    %1564 = vmatprep.subr.mxu0 0.0
    %1565 = vmatpush2.msra.mxu0 0.0
    %1566 = vmatprep.subr.mxu0 0.0
    %1567 = vmatpush2.msra.mxu0 0.0
    %1568 = vmatprep.subr.mxu0 0.0
    %1569 = vmatpush2.msra.mxu0 0.0
    %1570 = vmatprep.subr.mxu0 0.0
    %1571 = vmatpush2.msra.mxu0 0.0
    %1572 = vmatprep.subr.mxu0 0.0
    %1573 = vmatpush2.msra.mxu0 0.0
    %1574 = vmatprep.subr.mxu0 0.0
    %1575 = vmatpush2.msra.mxu0 0.0
    %1576 = vmatprep.subr.mxu0 0.0
    %1577 = vmatpush2.msra.mxu0 0.0
    %1578 = vmatprep.subr.mxu0 0.0
    %1579 = vmatpush2.msra.mxu0 0.0
    %1580 = vmatprep.subr.mxu0 0.0
    %1581 = vmatpush2.msra.mxu0 0.0
    %1582 = vmatprep.mubr.f32.mxu0 0.0
    %1583 = vmatmul.mubr.f32.gmra.mxu0 %v1512
    %v1584 = vpop.f32.mrf.mxu0
    %v1585 = vadd.f32 %v1517, %v1584
    %v1586 = vpop.f32.mrf.mxu0
    %1587 = vmatprep.mubr.f32.mxu0 0.0
    %1588 = vmatmul.mubr.f32.gmra.mxu0 %v1513
    %v1589 = vpop.f32.mrf.mxu0
    %v1590 = vadd.f32 %v1517, %v1589
    %v1591 = vpop.f32.mrf.mxu0
    %1592 = vdwg.mxu0
    %1593 = vst [vmem:[#allocation5] sm:$0xff] %v1585
    %1594 = vst [vmem:[#allocation5 + $0x8] sm:$0xff] %v1590
    // Predicated region
    $region14: #{tpu_custom_call.1} parent=1 // pred_check
      _
    $region15: #{tpu_custom_call.1} parent=1 // pred_check_branch
      %1596 = sbr.rel (0) target = $region17
    $region16: #{tpu_custom_call.1} parent=1 // pred_region
      %s1598 = ssub.s32 256, 256
      %1599 = vsyncadd [#allocation4], %s1598
      %s1600 = sshll.u32 [#allocation5], 4
      %s1601 = int_to_ptr.vmem [resolvable:$true] %s1600
      %1606 = dma.vmem_to_hbm [thread:$0]  %s1601, 256, %s2, [#allocation4], 128, 128, 8
    $region17: #{tpu_custom_call.1} parent=1 // pred_fallthru
      _
    // Predicated region
    $region18: #{tpu_custom_call.1} parent=1 // pred_check
      _
    $region19: #{tpu_custom_call.1} parent=1 // pred_check_branch
      %1608 = sbr.rel (0) target = $region21
    $region20: #{tpu_custom_call.1} parent=1 // pred_region
      %1609 = dma.done [#allocation4], 256
    $region21: #{tpu_custom_call.1} parent=1 // pred_fallthru
      _
    %1610 = vsyncpa [#allocation3], 1
    %1611 = vsyncpa [#allocation4], 1

</llo_original>
